<compile_context>
chip_gen: v7x
topology: tpu7x:2x2x1
jax: 0.10.0
libtpu: 0.0.40
codegen_flags: <defaults>
</compile_context>

<pallas_src>
import numpy as np
import jax
import jax.numpy as jnp
from jax.experimental import pallas as pl
from jax.experimental.pallas import tpu as pltpu


def down(x_nchw, w1_oihw, w2_oihw, *, compute_dtype=jnp.float32):
    """Pallas implementation of Down.forward: MaxPool2d(2) -> (conv3x3 -> ReLU) * 2."""
    N, Cin, H, W = x_nchw.shape
    Cmid = w1_oihw.shape[0]
    Cout = w2_oihw.shape[0]
    Ho, Wo = H // 2, W // 2            # MaxPool2d(2) floors odd sizes
    H, W = 2 * Ho, 2 * Wo
    x_nchw = x_nchw[:, :, :H, :W]

    Hp, Wp = Ho + 2, Wo + 2            # zero-padded conv-input image
    P = Hp * Wp                        # flattened padded image length
    M = Wp + 1                         # margin = max |tap offset| in flat coords
    L = W * (H - 1) - 1                # pooling window-max vector length
    HWo = Ho * Wo
    cd = compute_dtype

    # --- wrapper-side prep: only free reshapes + tiny constants --------------
    x_flat = x_nchw.reshape(N, Cin, H * W)     # memory-order-preserving (NCHW)

    # Conv weights, tap-major along lanes: w_mat[co, (dy*3+dx)*ci_dim + ci].
    w1_mat = jnp.transpose(w1_oihw, (0, 2, 3, 1)).reshape(Cmid, 9 * Cin).astype(cd)
    w2_mat = jnp.transpose(w2_oihw, (0, 2, 3, 1)).reshape(Cout, 9 * Cmid).astype(cd)

    # Constant 0/1 matrices (trace-time numpy, exact):
    #   se : window-max position (k = 2*yo*W + 2*xo) -> padded-flat position
    #   tm : padded-flat interior position           -> packed NCHW position
    #   msk: 1 on interior pixels, 0 on the zero ring (conv1 -> conv2 handoff)
    se = np.zeros((L, P), np.float32)
    tm = np.zeros((P, HWo), np.float32)
    msk = np.zeros((1, P), np.float32)
    for yo in range(Ho):
        for xo in range(Wo):
            p = (yo + 1) * Wp + (xo + 1)
            se[2 * yo * W + 2 * xo, p] = 1.0
            tm[p, yo * Wo + xo] = 1.0
            msk[0, p] = 1.0
    se = jnp.asarray(se)
    tm = jnp.asarray(tm)
    msk = jnp.asarray(msk)

    def kernel(x_ref, w1_ref, w2_ref, se_ref, msk_ref, tm_ref, o_ref, pad1, pad2):
        # ---- fused MaxPool2d(2) ---------------------------------------------
        # b[:, k] = max of the 2x2 window anchored at flat position k; only
        # k = 2*yo*W + 2*xo survive.  Four static lane-offset reads + 3 vmaxes.
        b = jnp.maximum(
            jnp.maximum(x_ref[:, pl.ds(0, L)], x_ref[:, pl.ds(1, L)]),
            jnp.maximum(x_ref[:, pl.ds(W, L)], x_ref[:, pl.ds(W + 1, L)]))
        # Scatter valid window maxima into the zero-padded flattened (Hp*Wp)
        # conv-input layout with one constant 0/1 matmul (exact selection).
        pooled = jnp.dot(b, se_ref[...], preferred_element_type=jnp.float32)

        pad1[...] = jnp.zeros(pad1.shape, pad1.dtype)
        pad1[:, pl.ds(M, P)] = pooled.astype(pad1.dtype)

        # ---- 3x3 conv (pad=1, no bias) + ReLU as 9 shifted matmuls ----------
        def conv3x3_relu(src, w_ref, cin):
            acc = None
            for dy in range(3):
                for dx in range(3):
                    off = (dy - 1) * Wp + (dx - 1)
                    tap = src[:, pl.ds(M + off, P)]                  # (cin, P)
                    t0 = (dy * 3 + dx) * cin
                    wt = w_ref[:, t0:t0 + cin]                       # (cout, cin)
                    prod = jnp.dot(wt, tap, preferred_element_type=jnp.float32)
                    acc = prod if acc is None else acc + prod
            return jnp.maximum(acc, 0.0)                             # f32 (cout, P)

        h1 = conv3x3_relu(pad1, w1_ref, Cin)                         # (Cmid, P)

        # conv1 -> conv2 handoff: re-zero the ring (border positions of h1 hold
        # garbage from out-of-window taps) and stage the padded image.
        pad2[...] = jnp.zeros(pad2.shape, pad2.dtype)
        pad2[:, pl.ds(M, P)] = (h1 * msk_ref[...]).astype(pad2.dtype)

        h2 = conv3x3_relu(pad2, w2_ref, Cmid)                        # (Cout, P)

        # Gather interior pixels into the packed NCHW output with one constant
        # 0/1 matmul -> dense store, no wrapper crop / transpose needed.
        o_ref[...] = jnp.dot(h2, tm_ref[...],
                             preferred_element_type=jnp.float32).astype(o_ref.dtype)

    flops = 2 * N * (Cin * L * P
                     + 9 * P * (Cin * Cmid + Cmid * Cout)
                     + Cout * P * HWo)
    bytes_accessed = (4 * N * (Cin * H * W + Cout * HWo)
                      + 4 * (se.size + tm.size + msk.size)
                      + np.dtype(cd).itemsize * (w1_mat.size + w2_mat.size))

    out = pl.pallas_call(
        kernel,
        out_shape=jax.ShapeDtypeStruct((N, Cout, HWo), x_nchw.dtype),
        grid=(N,),
        in_specs=[
            pl.BlockSpec((None, Cin, H * W), lambda n: (n, 0, 0)),
            pl.BlockSpec((Cmid, 9 * Cin), lambda n: (0, 0)),
            pl.BlockSpec((Cout, 9 * Cmid), lambda n: (0, 0)),
            pl.BlockSpec((L, P), lambda n: (0, 0)),
            pl.BlockSpec((1, P), lambda n: (0, 0)),
            pl.BlockSpec((P, HWo), lambda n: (0, 0)),
        ],
        out_specs=pl.BlockSpec((None, Cout, HWo), lambda n: (n, 0, 0)),
        scratch_shapes=[
            pltpu.VMEM((Cin, P + 2 * M), cd),    # padded pooled image (conv1 input)
            pltpu.VMEM((Cmid, P + 2 * M), cd),   # padded conv1 output (conv2 input)
        ],
        compiler_params=pltpu.CompilerParams(
            dimension_semantics=("parallel",),
            vmem_limit_bytes=32 * 1024 * 1024),
        cost_estimate=pl.CostEstimate(flops=flops, transcendentals=0,
                                      bytes_accessed=bytes_accessed),
    )(x_flat, w1_mat, w2_mat, se, msk, tm)

    return out.reshape(N, Cout, Ho, Wo)


def _reference(x_nchw, w1_oihw, w2_oihw):
    N, C, H, W = x_nchw.shape
    Ho, Wo = H // 2, W // 2
    xp = x_nchw[:, :, :2 * Ho, :2 * Wo].reshape(N, C, Ho, 2, Wo, 2).max(axis=(3, 5))
    dn = ("NCHW", "OIHW", "NCHW")
    y = jax.lax.conv_general_dilated(xp, w1_oihw, (1, 1), ((1, 1), (1, 1)),
                                     dimension_numbers=dn,
                                     precision=jax.lax.Precision.HIGHEST)
    y = jnp.maximum(y, 0.0)
    y = jax.lax.conv_general_dilated(y, w2_oihw, (1, 1), ((1, 1), (1, 1)),
                                     dimension_numbers=dn,
                                     precision=jax.lax.Precision.HIGHEST)
    return jnp.maximum(y, 0.0)


if __name__ == "__main__":
    # Down(in_channels=4, out_channels=8) -> mid_channels = out_channels = 8.
    N, Cin, H, W = 2, 4, 16, 16
    Cmid, Cout = 8, 8

    key = jax.random.PRNGKey(0)
    kx, k1, k2 = jax.random.split(key, 3)
    x = jax.random.normal(kx, (N, Cin, H, W), dtype=jnp.float32)
    # PyTorch Conv2d weight layout (out, in, kh, kw), bias=False.
    w1 = jax.random.normal(k1, (Cmid, Cin, 3, 3), dtype=jnp.float32) / np.sqrt(9 * Cin)
    w2 = jax.random.normal(k2, (Cout, Cmid, 3, 3), dtype=jnp.float32) / np.sqrt(9 * Cmid)

    ref = jax.block_until_ready(_reference(x, w1, w2))

    # f32 path (default): semantics-preserving, tight tolerance.
    out = jax.block_until_ready(down(x, w1, w2))
    assert out.shape == (N, Cout, H // 2, W // 2), out.shape
    np.testing.assert_allclose(np.asarray(out), np.asarray(ref), rtol=2e-3, atol=2e-3)

    # bf16 MXU-operand path (perf-review recommendation for v5e/v6e/v7x).
    out_bf16 = jax.block_until_ready(down(x, w1, w2, compute_dtype=jnp.bfloat16))
    np.testing.assert_allclose(np.asarray(out_bf16), np.asarray(ref), rtol=1e-1, atol=1e-1)

    print("KERNEL_OK")
</pallas_src>

<mosaic_0001>
module attributes {stable_mosaic.version = 11 : i64} {
  func.func @kernel(%arg0: i32, %arg1: memref<1x4x256xf32, #tpu.memory_space<vmem>>, %arg2: memref<8x36xf32, #tpu.memory_space<vmem>>, %arg3: memref<8x72xf32, #tpu.memory_space<vmem>>, %arg4: memref<239x100xf32, #tpu.memory_space<vmem>>, %arg5: memref<1x100xf32, #tpu.memory_space<vmem>>, %arg6: memref<100x64xf32, #tpu.memory_space<vmem>>, %arg7: memref<1x8x64xf32, #tpu.memory_space<vmem>>, %arg8: memref<4x122xf32, #tpu.memory_space<vmem>>, %arg9: memref<8x122xf32, #tpu.memory_space<vmem>>) attributes {dimension_semantics = [#tpu.dimension_semantics<parallel>], iteration_bounds = array<i64: 2>, scalar_prefetch = 0 : i64, scratch_operands = 2 : i64, tpu.core_type = #tpu.core_type<tc>, window_params = [{transform_indices = @transform_0, window_bounds = array<i64: 1, 4, 256>}, {pipeline_mode = #tpu.pipeline_mode<synchronous>, transform_indices = @transform_1, window_bounds = array<i64: 8, 36>}, {pipeline_mode = #tpu.pipeline_mode<synchronous>, transform_indices = @transform_2, window_bounds = array<i64: 8, 72>}, {pipeline_mode = #tpu.pipeline_mode<synchronous>, transform_indices = @transform_3, window_bounds = array<i64: 239, 100>}, {pipeline_mode = #tpu.pipeline_mode<synchronous>, transform_indices = @transform_4, window_bounds = array<i64: 1, 100>}, {pipeline_mode = #tpu.pipeline_mode<synchronous>, transform_indices = @transform_5, window_bounds = array<i64: 100, 64>}, {transform_indices = @transform_6, window_bounds = array<i64: 1, 8, 64>}]} {
    %c0 = arith.constant 0 : index
    %c0_0 = arith.constant 0 : index
    %c0_1 = arith.constant 0 : index
    %0 = vector.load %arg1[%c0, %c0_0, %c0_1] : memref<1x4x256xf32, #tpu.memory_space<vmem>>, vector<1x4x239xf32>
    %1 = vector.shape_cast %0 : vector<1x4x239xf32> to vector<4x239xf32>
    %c0_2 = arith.constant 0 : index
    %c0_3 = arith.constant 0 : index
    %c1 = arith.constant 1 : index
    %2 = vector.load %arg1[%c0_2, %c0_3, %c1] : memref<1x4x256xf32, #tpu.memory_space<vmem>>, vector<1x4x239xf32>
    %3 = vector.shape_cast %2 : vector<1x4x239xf32> to vector<4x239xf32>
    %4 = arith.maximumf %1, %3 : vector<4x239xf32>
    %c0_4 = arith.constant 0 : index
    %c0_5 = arith.constant 0 : index
    %c16 = arith.constant 16 : index
    %5 = vector.load %arg1[%c0_4, %c0_5, %c16] : memref<1x4x256xf32, #tpu.memory_space<vmem>>, vector<1x4x239xf32>
    %6 = vector.shape_cast %5 : vector<1x4x239xf32> to vector<4x239xf32>
    %c0_6 = arith.constant 0 : index
    %c0_7 = arith.constant 0 : index
    %c17 = arith.constant 17 : index
    %7 = vector.load %arg1[%c0_6, %c0_7, %c17] : memref<1x4x256xf32, #tpu.memory_space<vmem>>, vector<1x4x239xf32>
    %8 = vector.shape_cast %7 : vector<1x4x239xf32> to vector<4x239xf32>
    %9 = arith.maximumf %6, %8 : vector<4x239xf32>
    %10 = arith.maximumf %4, %9 : vector<4x239xf32>
    %c0_8 = arith.constant 0 : index
    %c0_9 = arith.constant 0 : index
    %11 = vector.load %arg4[%c0_8, %c0_9] : memref<239x100xf32, #tpu.memory_space<vmem>>, vector<239x100xf32>
    %cst = arith.constant dense<0.000000e+00> : vector<4x100xf32>
    %12 = tpu.matmul %10, %11, %cst {dimension_numbers = #tpu.dot_dimension_numbers<[1], [0], [0], [1], [0, 0, 1, 1], [], []>} : vector<4x239xf32>, vector<239x100xf32>, vector<4x100xf32> -> vector<4x100xf32>
    %cst_10 = arith.constant 0.000000e+00 : f32
    %13 = vector.broadcast %cst_10 : f32 to vector<4x122xf32>
    %c0_11 = arith.constant 0 : index
    %c0_12 = arith.constant 0 : index
    %14 = vector.load %arg8[%c0_11, %c0_12] : memref<4x122xf32, #tpu.memory_space<vmem>>, vector<4x122xf32>
    tpu.vector_store %arg8[%c0_11, %c0_12], %13 {strides = array<i32>} : memref<4x122xf32, #tpu.memory_space<vmem>>, vector<4x122xf32>,
    %c0_13 = arith.constant 0 : index
    %c11 = arith.constant 11 : index
    %15 = vector.load %arg8[%c0_13, %c11] : memref<4x122xf32, #tpu.memory_space<vmem>>, vector<4x100xf32>
    tpu.vector_store %arg8[%c0_13, %c11], %12 {strides = array<i32>} : memref<4x122xf32, #tpu.memory_space<vmem>>, vector<4x100xf32>,
    %c0_14 = arith.constant 0 : index
    %c0_15 = arith.constant 0 : index
    %16 = vector.load %arg8[%c0_14, %c0_15] : memref<4x122xf32, #tpu.memory_space<vmem>>, vector<4x100xf32>
    %c0_16 = arith.constant 0 : index
    %c0_17 = arith.constant 0 : index
    %17 = vector.load %arg2[%c0_16, %c0_17] : memref<8x36xf32, #tpu.memory_space<vmem>>, vector<8x4xf32>
    %cst_18 = arith.constant dense<0.000000e+00> : vector<8x100xf32>
    %18 = tpu.matmul %17, %16, %cst_18 {dimension_numbers = #tpu.dot_dimension_numbers<[1], [0], [0], [1], [0, 0, 1, 1], [], []>} : vector<8x4xf32>, vector<4x100xf32>, vector<8x100xf32> -> vector<8x100xf32>
    %c0_19 = arith.constant 0 : index
    %c1_20 = arith.constant 1 : index
    %19 = vector.load %arg8[%c0_19, %c1_20] : memref<4x122xf32, #tpu.memory_space<vmem>>, vector<4x100xf32>
    %c0_21 = arith.constant 0 : index
    %c4 = arith.constant 4 : index
    %20 = vector.load %arg2[%c0_21, %c4] : memref<8x36xf32, #tpu.memory_space<vmem>>, vector<8x4xf32>
    %cst_22 = arith.constant dense<0.000000e+00> : vector<8x100xf32>
    %21 = tpu.matmul %20, %19, %cst_22 {dimension_numbers = #tpu.dot_dimension_numbers<[1], [0], [0], [1], [0, 0, 1, 1], [], []>} : vector<8x4xf32>, vector<4x100xf32>, vector<8x100xf32> -> vector<8x100xf32>
    %22 = arith.addf %18, %21 : vector<8x100xf32>
    %c0_23 = arith.constant 0 : index
    %c2 = arith.constant 2 : index
    %23 = vector.load %arg8[%c0_23, %c2] : memref<4x122xf32, #tpu.memory_space<vmem>>, vector<4x100xf32>
    %c0_24 = arith.constant 0 : index
    %c8 = arith.constant 8 : index
    %24 = vector.load %arg2[%c0_24, %c8] : memref<8x36xf32, #tpu.memory_space<vmem>>, vector<8x4xf32>
    %cst_25 = arith.constant dense<0.000000e+00> : vector<8x100xf32>
    %25 = tpu.matmul %24, %23, %cst_25 {dimension_numbers = #tpu.dot_dimension_numbers<[1], [0], [0], [1], [0, 0, 1, 1], [], []>} : vector<8x4xf32>, vector<4x100xf32>, vector<8x100xf32> -> vector<8x100xf32>
    %26 = arith.addf %22, %25 : vector<8x100xf32>
    %c0_26 = arith.constant 0 : index
    %c10 = arith.constant 10 : index
    %27 = vector.load %arg8[%c0_26, %c10] : memref<4x122xf32, #tpu.memory_space<vmem>>, vector<4x100xf32>
    %c0_27 = arith.constant 0 : index
    %c12 = arith.constant 12 : index
    %28 = vector.load %arg2[%c0_27, %c12] : memref<8x36xf32, #tpu.memory_space<vmem>>, vector<8x4xf32>
    %cst_28 = arith.constant dense<0.000000e+00> : vector<8x100xf32>
    %29 = tpu.matmul %28, %27, %cst_28 {dimension_numbers = #tpu.dot_dimension_numbers<[1], [0], [0], [1], [0, 0, 1, 1], [], []>} : vector<8x4xf32>, vector<4x100xf32>, vector<8x100xf32> -> vector<8x100xf32>
    %30 = arith.addf %26, %29 : vector<8x100xf32>
    %c0_29 = arith.constant 0 : index
    %c11_30 = arith.constant 11 : index
    %31 = vector.load %arg8[%c0_29, %c11_30] : memref<4x122xf32, #tpu.memory_space<vmem>>, vector<4x100xf32>
    %c0_31 = arith.constant 0 : index
    %c16_32 = arith.constant 16 : index
    %32 = vector.load %arg2[%c0_31, %c16_32] : memref<8x36xf32, #tpu.memory_space<vmem>>, vector<8x4xf32>
    %cst_33 = arith.constant dense<0.000000e+00> : vector<8x100xf32>
    %33 = tpu.matmul %32, %31, %cst_33 {dimension_numbers = #tpu.dot_dimension_numbers<[1], [0], [0], [1], [0, 0, 1, 1], [], []>} : vector<8x4xf32>, vector<4x100xf32>, vector<8x100xf32> -> vector<8x100xf32>
    %34 = arith.addf %30, %33 : vector<8x100xf32>
    %c0_34 = arith.constant 0 : index
    %c12_35 = arith.constant 12 : index
    %35 = vector.load %arg8[%c0_34, %c12_35] : memref<4x122xf32, #tpu.memory_space<vmem>>, vector<4x100xf32>
    %c0_36 = arith.constant 0 : index
    %c20 = arith.constant 20 : index
    %36 = vector.load %arg2[%c0_36, %c20] : memref<8x36xf32, #tpu.memory_space<vmem>>, vector<8x4xf32>
    %cst_37 = arith.constant dense<0.000000e+00> : vector<8x100xf32>
    %37 = tpu.matmul %36, %35, %cst_37 {dimension_numbers = #tpu.dot_dimension_numbers<[1], [0], [0], [1], [0, 0, 1, 1], [], []>} : vector<8x4xf32>, vector<4x100xf32>, vector<8x100xf32> -> vector<8x100xf32>
    %38 = arith.addf %34, %37 : vector<8x100xf32>
    %c0_38 = arith.constant 0 : index
    %c20_39 = arith.constant 20 : index
    %39 = vector.load %arg8[%c0_38, %c20_39] : memref<4x122xf32, #tpu.memory_space<vmem>>, vector<4x100xf32>
    %c0_40 = arith.constant 0 : index
    %c24 = arith.constant 24 : index
    %40 = vector.load %arg2[%c0_40, %c24] : memref<8x36xf32, #tpu.memory_space<vmem>>, vector<8x4xf32>
    %cst_41 = arith.constant dense<0.000000e+00> : vector<8x100xf32>
    %41 = tpu.matmul %40, %39, %cst_41 {dimension_numbers = #tpu.dot_dimension_numbers<[1], [0], [0], [1], [0, 0, 1, 1], [], []>} : vector<8x4xf32>, vector<4x100xf32>, vector<8x100xf32> -> vector<8x100xf32>
    %42 = arith.addf %38, %41 : vector<8x100xf32>
    %c0_42 = arith.constant 0 : index
    %c21 = arith.constant 21 : index
    %43 = vector.load %arg8[%c0_42, %c21] : memref<4x122xf32, #tpu.memory_space<vmem>>, vector<4x100xf32>
    %c0_43 = arith.constant 0 : index
    %c28 = arith.constant 28 : index
    %44 = vector.load %arg2[%c0_43, %c28] : memref<8x36xf32, #tpu.memory_space<vmem>>, vector<8x4xf32>
    %cst_44 = arith.constant dense<0.000000e+00> : vector<8x100xf32>
    %45 = tpu.matmul %44, %43, %cst_44 {dimension_numbers = #tpu.dot_dimension_numbers<[1], [0], [0], [1], [0, 0, 1, 1], [], []>} : vector<8x4xf32>, vector<4x100xf32>, vector<8x100xf32> -> vector<8x100xf32>
    %46 = arith.addf %42, %45 : vector<8x100xf32>
    %c0_45 = arith.constant 0 : index
    %c22 = arith.constant 22 : index
    %47 = vector.load %arg8[%c0_45, %c22] : memref<4x122xf32, #tpu.memory_space<vmem>>, vector<4x100xf32>
    %c0_46 = arith.constant 0 : index
    %c32 = arith.constant 32 : index
    %48 = vector.load %arg2[%c0_46, %c32] : memref<8x36xf32, #tpu.memory_space<vmem>>, vector<8x4xf32>
    %cst_47 = arith.constant dense<0.000000e+00> : vector<8x100xf32>
    %49 = tpu.matmul %48, %47, %cst_47 {dimension_numbers = #tpu.dot_dimension_numbers<[1], [0], [0], [1], [0, 0, 1, 1], [], []>} : vector<8x4xf32>, vector<4x100xf32>, vector<8x100xf32> -> vector<8x100xf32>
    %50 = arith.addf %46, %49 : vector<8x100xf32>
    %cst_48 = arith.constant 0.000000e+00 : f32
    %51 = vector.broadcast %cst_48 : f32 to vector<8x100xf32>
    %52 = arith.maximumf %50, %51 : vector<8x100xf32>
    %cst_49 = arith.constant 0.000000e+00 : f32
    %53 = vector.broadcast %cst_49 : f32 to vector<8x122xf32>
    %c0_50 = arith.constant 0 : index
    %c0_51 = arith.constant 0 : index
    %54 = vector.load %arg9[%c0_50, %c0_51] : memref<8x122xf32, #tpu.memory_space<vmem>>, vector<8x122xf32>
    tpu.vector_store %arg9[%c0_50, %c0_51], %53 {strides = array<i32>} : memref<8x122xf32, #tpu.memory_space<vmem>>, vector<8x122xf32>,
    %c0_52 = arith.constant 0 : index
    %c0_53 = arith.constant 0 : index
    %55 = vector.load %arg5[%c0_52, %c0_53] : memref<1x100xf32, #tpu.memory_space<vmem>>, vector<1x100xf32>
    %56 = vector.broadcast %55 : vector<1x100xf32> to vector<8x100xf32>
    %57 = arith.mulf %52, %56 : vector<8x100xf32>
    %c0_54 = arith.constant 0 : index
    %c11_55 = arith.constant 11 : index
    %58 = vector.load %arg9[%c0_54, %c11_55] : memref<8x122xf32, #tpu.memory_space<vmem>>, vector<8x100xf32>
    tpu.vector_store %arg9[%c0_54, %c11_55], %57 {strides = array<i32>} : memref<8x122xf32, #tpu.memory_space<vmem>>, vector<8x100xf32>,
    %c0_56 = arith.constant 0 : index
    %c0_57 = arith.constant 0 : index
    %59 = vector.load %arg9[%c0_56, %c0_57] : memref<8x122xf32, #tpu.memory_space<vmem>>, vector<8x100xf32>
    %c0_58 = arith.constant 0 : index
    %c0_59 = arith.constant 0 : index
    %60 = vector.load %arg3[%c0_58, %c0_59] : memref<8x72xf32, #tpu.memory_space<vmem>>, vector<8x8xf32>
    %cst_60 = arith.constant dense<0.000000e+00> : vector<8x100xf32>
    %61 = tpu.matmul %60, %59, %cst_60 {dimension_numbers = #tpu.dot_dimension_numbers<[1], [0], [0], [1], [0, 0, 1, 1], [], []>} : vector<8x8xf32>, vector<8x100xf32>, vector<8x100xf32> -> vector<8x100xf32>
    %c0_61 = arith.constant 0 : index
    %c1_62 = arith.constant 1 : index
    %62 = vector.load %arg9[%c0_61, %c1_62] : memref<8x122xf32, #tpu.memory_space<vmem>>, vector<8x100xf32>
    %c0_63 = arith.constant 0 : index
    %c8_64 = arith.constant 8 : index
    %63 = vector.load %arg3[%c0_63, %c8_64] : memref<8x72xf32, #tpu.memory_space<vmem>>, vector<8x8xf32>
    %cst_65 = arith.constant dense<0.000000e+00> : vector<8x100xf32>
    %64 = tpu.matmul %63, %62, %cst_65 {dimension_numbers = #tpu.dot_dimension_numbers<[1], [0], [0], [1], [0, 0, 1, 1], [], []>} : vector<8x8xf32>, vector<8x100xf32>, vector<8x100xf32> -> vector<8x100xf32>
    %65 = arith.addf %61, %64 : vector<8x100xf32>
    %c0_66 = arith.constant 0 : index
    %c2_67 = arith.constant 2 : index
    %66 = vector.load %arg9[%c0_66, %c2_67] : memref<8x122xf32, #tpu.memory_space<vmem>>, vector<8x100xf32>
    %c0_68 = arith.constant 0 : index
    %c16_69 = arith.constant 16 : index
    %67 = vector.load %arg3[%c0_68, %c16_69] : memref<8x72xf32, #tpu.memory_space<vmem>>, vector<8x8xf32>
    %cst_70 = arith.constant dense<0.000000e+00> : vector<8x100xf32>
    %68 = tpu.matmul %67, %66, %cst_70 {dimension_numbers = #tpu.dot_dimension_numbers<[1], [0], [0], [1], [0, 0, 1, 1], [], []>} : vector<8x8xf32>, vector<8x100xf32>, vector<8x100xf32> -> vector<8x100xf32>
    %69 = arith.addf %65, %68 : vector<8x100xf32>
    %c0_71 = arith.constant 0 : index
    %c10_72 = arith.constant 10 : index
    %70 = vector.load %arg9[%c0_71, %c10_72] : memref<8x122xf32, #tpu.memory_space<vmem>>, vector<8x100xf32>
    %c0_73 = arith.constant 0 : index
    %c24_74 = arith.constant 24 : index
    %71 = vector.load %arg3[%c0_73, %c24_74] : memref<8x72xf32, #tpu.memory_space<vmem>>, vector<8x8xf32>
    %cst_75 = arith.constant dense<0.000000e+00> : vector<8x100xf32>
    %72 = tpu.matmul %71, %70, %cst_75 {dimension_numbers = #tpu.dot_dimension_numbers<[1], [0], [0], [1], [0, 0, 1, 1], [], []>} : vector<8x8xf32>, vector<8x100xf32>, vector<8x100xf32> -> vector<8x100xf32>
    %73 = arith.addf %69, %72 : vector<8x100xf32>
    %c0_76 = arith.constant 0 : index
    %c11_77 = arith.constant 11 : index
    %74 = vector.load %arg9[%c0_76, %c11_77] : memref<8x122xf32, #tpu.memory_space<vmem>>, vector<8x100xf32>
    %c0_78 = arith.constant 0 : index
    %c32_79 = arith.constant 32 : index
    %75 = vector.load %arg3[%c0_78, %c32_79] : memref<8x72xf32, #tpu.memory_space<vmem>>, vector<8x8xf32>
    %cst_80 = arith.constant dense<0.000000e+00> : vector<8x100xf32>
    %76 = tpu.matmul %75, %74, %cst_80 {dimension_numbers = #tpu.dot_dimension_numbers<[1], [0], [0], [1], [0, 0, 1, 1], [], []>} : vector<8x8xf32>, vector<8x100xf32>, vector<8x100xf32> -> vector<8x100xf32>
    %77 = arith.addf %73, %76 : vector<8x100xf32>
    %c0_81 = arith.constant 0 : index
    %c12_82 = arith.constant 12 : index
    %78 = vector.load %arg9[%c0_81, %c12_82] : memref<8x122xf32, #tpu.memory_space<vmem>>, vector<8x100xf32>
    %c0_83 = arith.constant 0 : index
    %c40 = arith.constant 40 : index
    %79 = vector.load %arg3[%c0_83, %c40] : memref<8x72xf32, #tpu.memory_space<vmem>>, vector<8x8xf32>
    %cst_84 = arith.constant dense<0.000000e+00> : vector<8x100xf32>
    %80 = tpu.matmul %79, %78, %cst_84 {dimension_numbers = #tpu.dot_dimension_numbers<[1], [0], [0], [1], [0, 0, 1, 1], [], []>} : vector<8x8xf32>, vector<8x100xf32>, vector<8x100xf32> -> vector<8x100xf32>
    %81 = arith.addf %77, %80 : vector<8x100xf32>
    %c0_85 = arith.constant 0 : index
    %c20_86 = arith.constant 20 : index
    %82 = vector.load %arg9[%c0_85, %c20_86] : memref<8x122xf32, #tpu.memory_space<vmem>>, vector<8x100xf32>
    %c0_87 = arith.constant 0 : index
    %c48 = arith.constant 48 : index
    %83 = vector.load %arg3[%c0_87, %c48] : memref<8x72xf32, #tpu.memory_space<vmem>>, vector<8x8xf32>
    %cst_88 = arith.constant dense<0.000000e+00> : vector<8x100xf32>
    %84 = tpu.matmul %83, %82, %cst_88 {dimension_numbers = #tpu.dot_dimension_numbers<[1], [0], [0], [1], [0, 0, 1, 1], [], []>} : vector<8x8xf32>, vector<8x100xf32>, vector<8x100xf32> -> vector<8x100xf32>
    %85 = arith.addf %81, %84 : vector<8x100xf32>
    %c0_89 = arith.constant 0 : index
    %c21_90 = arith.constant 21 : index
    %86 = vector.load %arg9[%c0_89, %c21_90] : memref<8x122xf32, #tpu.memory_space<vmem>>, vector<8x100xf32>
    %c0_91 = arith.constant 0 : index
    %c56 = arith.constant 56 : index
    %87 = vector.load %arg3[%c0_91, %c56] : memref<8x72xf32, #tpu.memory_space<vmem>>, vector<8x8xf32>
    %cst_92 = arith.constant dense<0.000000e+00> : vector<8x100xf32>
    %88 = tpu.matmul %87, %86, %cst_92 {dimension_numbers = #tpu.dot_dimension_numbers<[1], [0], [0], [1], [0, 0, 1, 1], [], []>} : vector<8x8xf32>, vector<8x100xf32>, vector<8x100xf32> -> vector<8x100xf32>
    %89 = arith.addf %85, %88 : vector<8x100xf32>
    %c0_93 = arith.constant 0 : index
    %c22_94 = arith.constant 22 : index
    %90 = vector.load %arg9[%c0_93, %c22_94] : memref<8x122xf32, #tpu.memory_space<vmem>>, vector<8x100xf32>
    %c0_95 = arith.constant 0 : index
    %c64 = arith.constant 64 : index
    %91 = vector.load %arg3[%c0_95, %c64] : memref<8x72xf32, #tpu.memory_space<vmem>>, vector<8x8xf32>
    %cst_96 = arith.constant dense<0.000000e+00> : vector<8x100xf32>
    %92 = tpu.matmul %91, %90, %cst_96 {dimension_numbers = #tpu.dot_dimension_numbers<[1], [0], [0], [1], [0, 0, 1, 1], [], []>} : vector<8x8xf32>, vector<8x100xf32>, vector<8x100xf32> -> vector<8x100xf32>
    %93 = arith.addf %89, %92 : vector<8x100xf32>
    %cst_97 = arith.constant 0.000000e+00 : f32
    %94 = vector.broadcast %cst_97 : f32 to vector<8x100xf32>
    %95 = arith.maximumf %93, %94 : vector<8x100xf32>
    %c0_98 = arith.constant 0 : index
    %c0_99 = arith.constant 0 : index
    %96 = vector.load %arg6[%c0_98, %c0_99] : memref<100x64xf32, #tpu.memory_space<vmem>>, vector<100x64xf32>
    %cst_100 = arith.constant dense<0.000000e+00> : vector<8x64xf32>
    %97 = tpu.matmul %95, %96, %cst_100 {dimension_numbers = #tpu.dot_dimension_numbers<[1], [0], [0], [1], [0, 0, 1, 1], [], []>} : vector<8x100xf32>, vector<100x64xf32>, vector<8x64xf32> -> vector<8x64xf32>
    %c0_101 = arith.constant 0 : index
    %c0_102 = arith.constant 0 : index
    %c0_103 = arith.constant 0 : index
    %98 = vector.load %arg7[%c0_101, %c0_102, %c0_103] : memref<1x8x64xf32, #tpu.memory_space<vmem>>, vector<1x8x64xf32>
    %99 = vector.shape_cast %98 : vector<1x8x64xf32> to vector<8x64xf32>
    %100 = vector.shape_cast %97 : vector<8x64xf32> to vector<1x8x64xf32>
    tpu.vector_store %arg7[%c0_101, %c0_102, %c0_103], %100 {strides = array<i32>} : memref<1x8x64xf32, #tpu.memory_space<vmem>>, vector<1x8x64xf32>,
    return
  }
  func.func @transform_0(%arg0: i32) -> (i32, i32, i32) {
    %c0_i32 = arith.constant 0 : i32
    %c0_i32_0 = arith.constant 0 : i32
    %c0_i32_1 = arith.constant 0 : i32
    return %arg0, %c0_i32, %c0_i32_0 : i32, i32, i32
  }
  func.func @transform_1(%arg0: i32) -> (i32, i32) {
    %c0_i32 = arith.constant 0 : i32
    %c0_i32_0 = arith.constant 0 : i32
    %c0_i32_1 = arith.constant 0 : i32
    return %c0_i32, %c0_i32_0 : i32, i32
  }
  func.func @transform_2(%arg0: i32) -> (i32, i32) {
    %c0_i32 = arith.constant 0 : i32
    %c0_i32_0 = arith.constant 0 : i32
    %c0_i32_1 = arith.constant 0 : i32
    return %c0_i32, %c0_i32_0 : i32, i32
  }
  func.func @transform_3(%arg0: i32) -> (i32, i32) {
    %c0_i32 = arith.constant 0 : i32
    %c0_i32_0 = arith.constant 0 : i32
    %c0_i32_1 = arith.constant 0 : i32
    return %c0_i32, %c0_i32_0 : i32, i32
  }
  func.func @transform_4(%arg0: i32) -> (i32, i32) {
    %c0_i32 = arith.constant 0 : i32
    %c0_i32_0 = arith.constant 0 : i32
    %c0_i32_1 = arith.constant 0 : i32
    return %c0_i32, %c0_i32_0 : i32, i32
  }
  func.func @transform_5(%arg0: i32) -> (i32, i32) {
    %c0_i32 = arith.constant 0 : i32
    %c0_i32_0 = arith.constant 0 : i32
    %c0_i32_1 = arith.constant 0 : i32
    return %c0_i32, %c0_i32_0 : i32, i32
  }
  func.func @transform_6(%arg0: i32) -> (i32, i32, i32) {
    %c0_i32 = arith.constant 0 : i32
    %c0_i32_0 = arith.constant 0 : i32
    %c0_i32_1 = arith.constant 0 : i32
    return %arg0, %c0_i32, %c0_i32_0 : i32, i32, i32
  }
}

</mosaic_0001>

<llo_original>
// kernel: tpu_custom_call.1
$region0: #{tpu_custom_call.1}
  #allocation0 [shape = 'u32[]', space=smem, size = 0x4, offset = 0x4, fixed_abs, tag = 'smem constant byte address 0x4 - core index']
  #allocation1 [shape = 'u32[144,128]{1,0:T(1,128)}', space=vmem, size = 0x12000, scoped, tag = 'internal scratch']
  #allocation2 [shape = 'f32[4,122]{1,0:T(4,128)}', space=vmem, size = 0x800, scoped, tag = 'scratch operand']
  #allocation3 [shape = 'f32[8,122]{1,0:T(8,128)}', space=vmem, size = 0x1000, scoped, tag = 'scratch operand']
  %s0 = inlined_call_operand.vmem [shape: f32[2,4,256], index: 0, kind: input, shape index: {}]
  %s1 = inlined_call_operand.vmem [shape: f32[8,36], index: 1, kind: input, shape index: {}]
  %s2 = inlined_call_operand.vmem [shape: f32[8,72], index: 2, kind: input, shape index: {}]
  %s3 = inlined_call_operand.vmem [shape: f32[239,100], index: 3, kind: input, shape index: {}]
  %s4 = inlined_call_operand.vmem [shape: f32[1,100], index: 4, kind: input, shape index: {}]
  %s5 = inlined_call_operand.vmem [shape: f32[100,64], index: 5, kind: input, shape index: {}]
  %s6 = inlined_call_operand.hbm [shape: f32[2,8,64], index: 6, kind: output, shape index: {}]
  %s7 = sld [smem:[#allocation0]]
  $region57: #{tpu_custom_call.1} parent=0
    _
  %s9 = ssub.s32 1, %s7
  %s10 = scalar_select 0, %s9, %s7
  $region1: #{tpu_custom_call.1} parent=0
    #allocation4 [shape = 'u8[8192]{0}', space=vmem, size = 0x2000, scoped, tag = 'output window, operand 0']
    #allocation5 [shape = 's32[2]{0}', space=sflag, size = 0x8, scoped, tag = 'scoped memory for tpu_custom_call.1']
    %11 = vsyncpa [#allocation5], 0
    %s12 = scalar_lea.sflag [#allocation5], 1
    %13 = vsyncpa %s12, 0
    loop: start=0, step=1, limit=4
    $region2: #{tpu_custom_call.1} parent=1 // loop_pre_header
      _
    $region3: #{tpu_custom_call.1} parent=1 // loop_header
      %s15 = sphi 0, %s19
      %p16 = scmp.ge.s32.totalorder %s15, 4
      %s25 = sphi 0, %s27
      %s28 = sphi 0, %s25
      %s29 = sphi 0, %s28
      %s45 = sphi 0, %s29
      %s49 = sphi 0, %s49
      %s51 = sphi 0, %s49
      %s52 = sphi 0, %s51
      %s66 = sphi 0, %s52
      %s70 = sphi 0, %s70
      %s72 = sphi 0, %s70
      %s73 = sphi 0, %s72
      %s87 = sphi 0, %s73
      %s91 = sphi 0, %s91
      %s93 = sphi 0, %s91
      %s94 = sphi 0, %s93
      %s108 = sphi 0, %s94
      %s112 = sphi 0, %s112
      %s114 = sphi 0, %s112
      %s115 = sphi 0, %s114
      %s129 = sphi 0, %s115
      %s133 = sphi 0, %s133
      %s135 = sphi 0, %s133
      %s136 = sphi 0, %s135
      %s150 = sphi 0, %s136
      %s156 = sphi 0, %s158
      %s159 = sphi 0, %s156
      %s160 = sphi 0, %s159
      %s176 = sphi 0, %s160
    $region4: #{tpu_custom_call.1} parent=1 // loop_header_branch
      %18 = sbr.rel (%p16) target = $region8
    $region5: #{tpu_custom_call.1} parent=1 // loop_body
      %s20 = ssub.s32 %s15, 1
      %s21 = ssub.s32 %s15, 2
      %s22 = sadd.s32 %s15, 1
      %s23 = ssub.s32 %s15, %s22
      %p24 = scmp.eq.s32.totalorder %s23, 0
      %s26 = sadd.s32 %s25, 1
      %s27 = scalar_select %p24, %s25, %s26
      %p30 = pneg %p24
      %p31 = scmp.eq.s32.totalorder %s15, 1
      %p32 = por %p30, %p31
      %p33 = scmp.ne.s32.totalorder %s25, %s28
      %p34 = scmp.eq.s32.totalorder %s15, 0
      %p35 = por %p33, %p34
      %p36 = scmp.ne.s32.totalorder %s25, %s28
      %p37 = scmp.eq.s32.totalorder %s20, 1
      %p38 = por %p36, %p37
      %p39 = scmp.ne.s32.totalorder %s28, %s29
      %p40 = scmp.eq.s32.totalorder %s20, 0
      %p41 = por %p39, %p40
      %p42 = scmp.ne.s32.totalorder %s28, %s29
      %p43 = scmp.eq.s32.totalorder %s21, 1
      %p44 = por %p42, %p43
      %p46 = scmp.ne.s32.totalorder %s29, %s45
      %p47 = scmp.eq.s32.totalorder %s21, 0
      %p48 = por %p46, %p47
      %s50 = sadd.s32 %s49, 1
      %p53 = scmp.eq.s32.totalorder %s15, 1
      %p54 = scmp.ne.s32.totalorder %s49, %s51
      %p55 = scmp.eq.s32.totalorder %s15, 0
      %p56 = por %p54, %p55
      %p57 = scmp.ne.s32.totalorder %s49, %s51
      %p58 = scmp.eq.s32.totalorder %s20, 1
      %p59 = por %p57, %p58
      %p60 = scmp.ne.s32.totalorder %s51, %s52
      %p61 = scmp.eq.s32.totalorder %s20, 0
      %p62 = por %p60, %p61
      %p63 = scmp.ne.s32.totalorder %s51, %s52
      %p64 = scmp.eq.s32.totalorder %s21, 1
      %p65 = por %p63, %p64
      %p67 = scmp.ne.s32.totalorder %s52, %s66
      %p68 = scmp.eq.s32.totalorder %s21, 0
      %p69 = por %p67, %p68
      %s71 = sadd.s32 %s70, 1
      %p74 = scmp.eq.s32.totalorder %s15, 1
      %p75 = scmp.ne.s32.totalorder %s70, %s72
      %p76 = scmp.eq.s32.totalorder %s15, 0
      %p77 = por %p75, %p76
      %p78 = scmp.ne.s32.totalorder %s70, %s72
      %p79 = scmp.eq.s32.totalorder %s20, 1
      %p80 = por %p78, %p79
      %p81 = scmp.ne.s32.totalorder %s72, %s73
      %p82 = scmp.eq.s32.totalorder %s20, 0
      %p83 = por %p81, %p82
      %p84 = scmp.ne.s32.totalorder %s72, %s73
      %p85 = scmp.eq.s32.totalorder %s21, 1
      %p86 = por %p84, %p85
      %p88 = scmp.ne.s32.totalorder %s73, %s87
      %p89 = scmp.eq.s32.totalorder %s21, 0
      %p90 = por %p88, %p89
      %s92 = sadd.s32 %s91, 1
      %p95 = scmp.eq.s32.totalorder %s15, 1
      %p96 = scmp.ne.s32.totalorder %s91, %s93
      %p97 = scmp.eq.s32.totalorder %s15, 0
      %p98 = por %p96, %p97
      %p99 = scmp.ne.s32.totalorder %s91, %s93
      %p100 = scmp.eq.s32.totalorder %s20, 1
      %p101 = por %p99, %p100
      %p102 = scmp.ne.s32.totalorder %s93, %s94
      %p103 = scmp.eq.s32.totalorder %s20, 0
      %p104 = por %p102, %p103
      %p105 = scmp.ne.s32.totalorder %s93, %s94
      %p106 = scmp.eq.s32.totalorder %s21, 1
      %p107 = por %p105, %p106
      %p109 = scmp.ne.s32.totalorder %s94, %s108
      %p110 = scmp.eq.s32.totalorder %s21, 0
      %p111 = por %p109, %p110
      %s113 = sadd.s32 %s112, 1
      %p116 = scmp.eq.s32.totalorder %s15, 1
      %p117 = scmp.ne.s32.totalorder %s112, %s114
      %p118 = scmp.eq.s32.totalorder %s15, 0
      %p119 = por %p117, %p118
      %p120 = scmp.ne.s32.totalorder %s112, %s114
      %p121 = scmp.eq.s32.totalorder %s20, 1
      %p122 = por %p120, %p121
      %p123 = scmp.ne.s32.totalorder %s114, %s115
      %p124 = scmp.eq.s32.totalorder %s20, 0
      %p125 = por %p123, %p124
      %p126 = scmp.ne.s32.totalorder %s114, %s115
      %p127 = scmp.eq.s32.totalorder %s21, 1
      %p128 = por %p126, %p127
      %p130 = scmp.ne.s32.totalorder %s115, %s129
      %p131 = scmp.eq.s32.totalorder %s21, 0
      %p132 = por %p130, %p131
      %s134 = sadd.s32 %s133, 1
      %p137 = scmp.eq.s32.totalorder %s15, 1
      %p138 = scmp.ne.s32.totalorder %s133, %s135
      %p139 = scmp.eq.s32.totalorder %s15, 0
      %p140 = por %p138, %p139
      %p141 = scmp.ne.s32.totalorder %s133, %s135
      %p142 = scmp.eq.s32.totalorder %s20, 1
      %p143 = por %p141, %p142
      %p144 = scmp.ne.s32.totalorder %s135, %s136
      %p145 = scmp.eq.s32.totalorder %s20, 0
      %p146 = por %p144, %p145
      %p147 = scmp.ne.s32.totalorder %s135, %s136
      %p148 = scmp.eq.s32.totalorder %s21, 1
      %p149 = por %p147, %p148
      %p151 = scmp.ne.s32.totalorder %s136, %s150
      %p152 = scmp.eq.s32.totalorder %s21, 0
      %p153 = por %p151, %p152
      %s154 = ssub.s32 %s15, %s22
      %p155 = scmp.eq.s32.totalorder %s154, 0
      %s157 = sadd.s32 %s156, 1
      %s158 = scalar_select %p155, %s156, %s157
      %p161 = pneg %p155
      %p162 = scmp.eq.s32.totalorder %s15, 1
      %p163 = por %p161, %p162
      %p164 = scmp.ne.s32.totalorder %s156, %s159
      %p165 = scmp.eq.s32.totalorder %s15, 0
      %p166 = por %p164, %p165
      %p167 = scmp.ne.s32.totalorder %s156, %s159
      %p168 = scmp.eq.s32.totalorder %s20, 1
      %p169 = por %p167, %p168
      %p170 = scmp.ne.s32.totalorder %s159, %s160
      %p171 = scmp.eq.s32.totalorder %s20, 0
      %p172 = por %p170, %p171
      %p173 = scmp.ne.s32.totalorder %s159, %s160
      %p174 = scmp.eq.s32.totalorder %s21, 1
      %p175 = por %p173, %p174
      %p177 = scmp.ne.s32.totalorder %s160, %s176
      %p178 = scmp.eq.s32.totalorder %s21, 0
      %p179 = por %p177, %p178
      %p180 = scmp.le.s32.totalorder 1, %s15
      %p181 = scmp.lt.s32.totalorder %s15, 3
      %p182 = pnand %p180, %p181
      %p183 = pneg %p182
      // Predicated region
      $region9: #{tpu_custom_call.1} parent=5 // pred_check
        _
      $region10: #{tpu_custom_call.1} parent=5 // pred_check_branch
        %185 = sbr.rel (%p182) target = $region12
      $region11: #{tpu_custom_call.1} parent=5 // pred_region
        %s186 = ssub.s32 %s15, 1
        // Predicated region
        $region13: #{tpu_custom_call.1} parent=11 // pred_check
          %p187 = pneg %p62
        $region14: #{tpu_custom_call.1} parent=11 // pred_check_branch
          %189 = sbr.rel (%p187) target = $region16
        $region15: #{tpu_custom_call.1} parent=11 // pred_region
          _
        $region16: #{tpu_custom_call.1} parent=11 // pred_fallthru
          _
        // Predicated region
        $region17: #{tpu_custom_call.1} parent=11 // pred_check
          %p190 = pneg %p83
        $region18: #{tpu_custom_call.1} parent=11 // pred_check_branch
          %192 = sbr.rel (%p190) target = $region20
        $region19: #{tpu_custom_call.1} parent=11 // pred_region
          _
        $region20: #{tpu_custom_call.1} parent=11 // pred_fallthru
          _
        // Predicated region
        $region21: #{tpu_custom_call.1} parent=11 // pred_check
          %p193 = pneg %p104
        $region22: #{tpu_custom_call.1} parent=11 // pred_check_branch
          %195 = sbr.rel (%p193) target = $region24
        $region23: #{tpu_custom_call.1} parent=11 // pred_region
          _
        $region24: #{tpu_custom_call.1} parent=11 // pred_fallthru
          _
        // Predicated region
        $region25: #{tpu_custom_call.1} parent=11 // pred_check
          %p196 = pneg %p125
        $region26: #{tpu_custom_call.1} parent=11 // pred_check_branch
          %198 = sbr.rel (%p196) target = $region28
        $region27: #{tpu_custom_call.1} parent=11 // pred_region
          _
        $region28: #{tpu_custom_call.1} parent=11 // pred_fallthru
          _
        // Predicated region
        $region29: #{tpu_custom_call.1} parent=11 // pred_check
          %p199 = pneg %p146
        $region30: #{tpu_custom_call.1} parent=11 // pred_check_branch
          %201 = sbr.rel (%p199) target = $region32
        $region31: #{tpu_custom_call.1} parent=11 // pred_region
          _
        $region32: #{tpu_custom_call.1} parent=11 // pred_fallthru
          _
      $region12: #{tpu_custom_call.1} parent=5 // pred_fallthru
        _
      %p202 = scmp.lt.s32.totalorder %s15, 2
      // Predicated region
      $region33: #{tpu_custom_call.1} parent=5 // pred_check
        %p203 = pneg %p202
      $region34: #{tpu_custom_call.1} parent=5 // pred_check_branch
        %205 = sbr.rel (%p203) target = $region36
      $region35: #{tpu_custom_call.1} parent=5 // pred_region
        // Predicated region
        $region37: #{tpu_custom_call.1} parent=35 // pred_check
          %p206 = pneg %p35
        $region38: #{tpu_custom_call.1} parent=35 // pred_check_branch
          %208 = sbr.rel (%p206) target = $region40
        $region39: #{tpu_custom_call.1} parent=35 // pred_region
          %p209 = scmp.lt.s32.totalorder %s15, 1
          %s210 = scalar_select %p209, %s15, 1
          %s211 = smul.addr %s210, 2
          %s212 = smul.addr %s211, 4
          %s213 = scalar_lea.vmem %s0, %s212
        $region40: #{tpu_custom_call.1} parent=35 // pred_fallthru
          _
      $region36: #{tpu_custom_call.1} parent=5 // pred_fallthru
        _
      %p214 = scmp.le.s32.totalorder 1, %s15
      %p215 = scmp.lt.s32.totalorder %s15, 3
      %p216 = pnand %p214, %p215
      %p217 = pneg %p216
      // Predicated region
      $region41: #{tpu_custom_call.1} parent=5 // pred_check
        _
      $region42: #{tpu_custom_call.1} parent=5 // pred_check_branch
        %219 = sbr.rel (%p216) target = $region44
      $region43: #{tpu_custom_call.1} parent=5 // pred_region
        %s220 = ssub.s32 %s15, 1
        %p221 = scmp.lt.s32.totalorder %s20, 1
        %s222 = scalar_select %p221, %s20, 1
        %s223 = smul.addr %s222, 2
        %s224 = smul.addr %s223, 4
        %s225 = scalar_lea.vmem %s0, %s224
        %p226 = pneg %p41
        %p227 = pneg %p38
        %p228 = pneg %p62
        %p229 = pneg %p59
        %p230 = pneg %p83
        %p231 = pneg %p80
        %p232 = pneg %p104
        %p233 = pneg %p101
        %p234 = pneg %p125
        %p235 = pneg %p122
        %p236 = pneg %p146
        %p237 = pneg %p143
        %p238 = pneg %p172
        %p239 = pneg %p169
        %s240 = sand.u32 %s159, 1
        %s241 = scalar_lea.sflag [#allocation5], %s240
        %s242 = sand.u32 %s159, 1
        %s243 = smul.addr %s242, 8
        %s244 = scalar_lea.vmem [#allocation4], %s243
        %p245 = scmp.lt.s32.totalorder %s20, 1
        %s246 = scalar_select %p245, %s20, 1
        %s247 = smul.addr %s246, 2
        %s248 = smul.addr %s247, 4
        %s249 = scalar_lea.vmem %s0, %s248
        %v250 = vld [vmem:[%s249] sm:$0xff]
        %252 = vrot.lane.b32.xlu0 %v250, 127
        %v253 = vpop.permute.xlu0 %252
        %v254 = vrot.slane %v253, 4
        %vm255 = vcmask 1039360
        %v256 = vsel %vm255, %v253, %v254
        %v258 = vmax.f32 %v250, %v256
        %260 = vrot.lane.b32.xlu0 %v258, 112
        %v261 = vpop.permute.xlu0 %260
        %v262 = vrot.slane %v261, 4
        %vm263 = vcmask 916480
        %v264 = vsel %vm263, %v261, %v262
        %v266 = vmax.f32 %v258, %v264
        %v267 = vld [vmem:[%s3] sm:$0xff]
        %v268 = vld [vmem:[%s3 + $0x8] sm:$0xff]
        %v269 = vld [vmem:[%s3 + $0x10] sm:$0xff]
        %v270 = vld [vmem:[%s3 + $0x18] sm:$0xff]
        %v271 = vld [vmem:[%s3 + $0x20] sm:$0xff]
        %v272 = vld [vmem:[%s3 + $0x28] sm:$0xff]
        %v273 = vld [vmem:[%s3 + $0x30] sm:$0xff]
        %v274 = vld [vmem:[%s3 + $0x38] sm:$0xff]
        %v275 = vld [vmem:[%s3 + $0x40] sm:$0xff]
        %v276 = vld [vmem:[%s3 + $0x48] sm:$0xff]
        %v277 = vld [vmem:[%s3 + $0x50] sm:$0xff]
        %v278 = vld [vmem:[%s3 + $0x58] sm:$0xff]
        %v279 = vld [vmem:[%s3 + $0x60] sm:$0xff]
        %v280 = vld [vmem:[%s3 + $0x68] sm:$0xff]
        %v281 = vld [vmem:[%s3 + $0x70] sm:$0xff]
        %v282 = vld [vmem:[%s3 + $0x78] sm:$0xff]
        %v283 = vld [vmem:[%s3 + $0x80] sm:$0xff]
        %v284 = vld [vmem:[%s3 + $0x88] sm:$0xff]
        %v285 = vld [vmem:[%s3 + $0x90] sm:$0xff]
        %v286 = vld [vmem:[%s3 + $0x98] sm:$0xff]
        %v287 = vld [vmem:[%s3 + $0xa0] sm:$0xff]
        %v288 = vld [vmem:[%s3 + $0xa8] sm:$0xff]
        %v289 = vld [vmem:[%s3 + $0xb0] sm:$0xff]
        %v290 = vld [vmem:[%s3 + $0xb8] sm:$0xff]
        %v291 = vld [vmem:[%s3 + $0xc0] sm:$0xff]
        %v292 = vld [vmem:[%s3 + $0xc8] sm:$0xff]
        %v293 = vld [vmem:[%s3 + $0xd0] sm:$0xff]
        %v294 = vld [vmem:[%s3 + $0xd8] sm:$0xff]
        %v295 = vld [vmem:[%s3 + $0xe0] sm:$0xff]
        %v296 = vld [vmem:[%s3 + $0xe8] sm:$0x7f]
        %v298 = vcombine.high %v266, %v266
        %vm299 = vcmask 908288
        %v300 = vsel %vm299, %v298, 0
        %vm302 = vcmask 1046528
        %v304 = vsel %vm302, %v296, 0
        %306 = vmatprep.subr.mxu0 0.0
        %307 = vmatpush1.msra.mxu0 %v267
        %308 = vmatprep.subr.mxu0 0.0
        %309 = vmatpush1.msra.mxu0 %v268
        %310 = vmatprep.subr.mxu0 0.0
        %311 = vmatpush1.msra.mxu0 %v269
        %312 = vmatprep.subr.mxu0 0.0
        %313 = vmatpush1.msra.mxu0 %v270
        %314 = vmatprep.subr.mxu0 0.0
        %315 = vmatpush1.msra.mxu0 %v271
        %316 = vmatprep.subr.mxu0 0.0
        %317 = vmatpush1.msra.mxu0 %v272
        %318 = vmatprep.subr.mxu0 0.0
        %319 = vmatpush1.msra.mxu0 %v273
        %320 = vmatprep.subr.mxu0 0.0
        %321 = vmatpush1.msra.mxu0 %v274
        %322 = vmatprep.subr.mxu0 0.0
        %323 = vmatpush1.msra.mxu0 %v275
        %324 = vmatprep.subr.mxu0 0.0
        %325 = vmatpush1.msra.mxu0 %v276
        %326 = vmatprep.subr.mxu0 0.0
        %327 = vmatpush1.msra.mxu0 %v277
        %328 = vmatprep.subr.mxu0 0.0
        %329 = vmatpush1.msra.mxu0 %v278
        %330 = vmatprep.subr.mxu0 0.0
        %331 = vmatpush1.msra.mxu0 %v279
        %332 = vmatprep.subr.mxu0 0.0
        %333 = vmatpush1.msra.mxu0 %v280
        %334 = vmatprep.subr.mxu0 0.0
        %335 = vmatpush1.msra.mxu0 %v281
        %336 = vmatprep.subr.mxu0 0.0
        %337 = vmatpush1.msra.mxu0 %v282
        %338 = vmatprep.subr.mxu0 0.0
        %339 = vmatpush1.msra.mxu0 %v283
        %340 = vmatprep.subr.mxu0 0.0
        %341 = vmatpush1.msra.mxu0 %v284
        %342 = vmatprep.subr.mxu0 0.0
        %343 = vmatpush1.msra.mxu0 %v285
        %344 = vmatprep.subr.mxu0 0.0
        %345 = vmatpush1.msra.mxu0 %v286
        %346 = vmatprep.subr.mxu0 0.0
        %347 = vmatpush1.msra.mxu0 %v287
        %348 = vmatprep.subr.mxu0 0.0
        %349 = vmatpush1.msra.mxu0 %v288
        %350 = vmatprep.subr.mxu0 0.0
        %351 = vmatpush1.msra.mxu0 %v289
        %352 = vmatprep.subr.mxu0 0.0
        %353 = vmatpush1.msra.mxu0 %v290
        %354 = vmatprep.subr.mxu0 0.0
        %355 = vmatpush1.msra.mxu0 %v291
        %356 = vmatprep.subr.mxu0 0.0
        %357 = vmatpush1.msra.mxu0 %v292
        %358 = vmatprep.subr.mxu0 0.0
        %359 = vmatpush1.msra.mxu0 %v293
        %360 = vmatprep.subr.mxu0 0.0
        %361 = vmatpush1.msra.mxu0 %v294
        %362 = vmatprep.subr.mxu0 0.0
        %363 = vmatpush1.msra.mxu0 %v295
        %364 = vmatprep.subr.mxu0 0.0
        %365 = vmatpush1.msra.mxu0 %v304
        %366 = vmatprep.subr.mxu0 0.0
        %367 = vmatpush1.msra.mxu0 0.0
        %368 = vmatprep.subr.mxu0 0.0
        %369 = vmatpush1.msra.mxu0 0.0
        %370 = vmatprep.mubr.f32.mxu0 %v300
        %371 = vmatmul.mubr.f32.gmra.mrb[0].mxu0 %v266
        %v372 = vpop.f32.mrb[0].mxu0
        %v373 = vadd.f32 0.0, %v372
        %v374 = vpop.f32.mrb[0].mxu0
        %375 = vdwg.mxu0
        %vm376 = vcmask 994304
        %377 = vst.msk [vmem:[#allocation2] sm:$0xf] %vm376, 0.0
        %379 = vrot.lane.b32.xlu0 %v373, 11
        %v380 = vpop.permute.xlu0 %379
        %vm382 = vcmask 904280
        %383 = vst.msk [vmem:[#allocation2] sm:$0xf] %vm382, %v380
        %v384 = vld [vmem:[#allocation2] sm:$0xf]
        %v385 = vld [vmem:[%s1] sm:$0xff]
        %387 = vrot.lane.b32.xlu0 %v385, 124
        %v388 = vpop.permute.xlu0 %387
        %390 = vrot.lane.b32.xlu0 %v384, 127
        %v391 = vpop.permute.xlu0 %390
        %vm392 = vcmask 31744
        %v393 = vsel %vm392, %v388, 0
        %vm395 = vcmask 1043456
        %v396 = vsel %vm395, %v391, 0
        %398 = vmatprep.subr.mxu0 0.0
        %399 = vmatpush1.msra.mxu0 %v396
        %400 = vmatprep.subr.mxu0 0.0
        %401 = vmatpush1.msra.mxu0 0.0
        %402 = vmatprep.subr.mxu0 0.0
        %403 = vmatpush1.msra.mxu0 0.0
        %404 = vmatprep.subr.mxu0 0.0
        %405 = vmatpush1.msra.mxu0 0.0
        %406 = vmatprep.subr.mxu0 0.0
        %407 = vmatpush1.msra.mxu0 0.0
        %408 = vmatprep.subr.mxu0 0.0
        %409 = vmatpush1.msra.mxu0 0.0
        %410 = vmatprep.subr.mxu0 0.0
        %411 = vmatpush1.msra.mxu0 0.0
        %412 = vmatprep.subr.mxu0 0.0
        %413 = vmatpush1.msra.mxu0 0.0
        %414 = vmatprep.subr.mxu0 0.0
        %415 = vmatpush1.msra.mxu0 0.0
        %416 = vmatprep.subr.mxu0 0.0
        %417 = vmatpush1.msra.mxu0 0.0
        %418 = vmatprep.subr.mxu0 0.0
        %419 = vmatpush1.msra.mxu0 0.0
        %420 = vmatprep.subr.mxu0 0.0
        %421 = vmatpush1.msra.mxu0 0.0
        %422 = vmatprep.subr.mxu0 0.0
        %423 = vmatpush1.msra.mxu0 0.0
        %424 = vmatprep.subr.mxu0 0.0
        %425 = vmatpush1.msra.mxu0 0.0
        %426 = vmatprep.subr.mxu0 0.0
        %427 = vmatpush1.msra.mxu0 0.0
        %428 = vmatprep.subr.mxu0 0.0
        %429 = vmatpush1.msra.mxu0 0.0
        %430 = vmatprep.subr.mxu0 0.0
        %431 = vmatpush1.msra.mxu0 0.0
        %432 = vmatprep.subr.mxu0 0.0
        %433 = vmatpush1.msra.mxu0 0.0
        %434 = vmatprep.subr.mxu0 0.0
        %435 = vmatpush1.msra.mxu0 0.0
        %436 = vmatprep.subr.mxu0 0.0
        %437 = vmatpush1.msra.mxu0 0.0
        %438 = vmatprep.subr.mxu0 0.0
        %439 = vmatpush1.msra.mxu0 0.0
        %440 = vmatprep.subr.mxu0 0.0
        %441 = vmatpush1.msra.mxu0 0.0
        %442 = vmatprep.subr.mxu0 0.0
        %443 = vmatpush1.msra.mxu0 0.0
        %444 = vmatprep.subr.mxu0 0.0
        %445 = vmatpush1.msra.mxu0 0.0
        %446 = vmatprep.subr.mxu0 0.0
        %447 = vmatpush1.msra.mxu0 0.0
        %448 = vmatprep.subr.mxu0 0.0
        %449 = vmatpush1.msra.mxu0 0.0
        %450 = vmatprep.subr.mxu0 0.0
        %451 = vmatpush1.msra.mxu0 0.0
        %452 = vmatprep.subr.mxu0 0.0
        %453 = vmatpush1.msra.mxu0 0.0
        %454 = vmatprep.subr.mxu0 0.0
        %455 = vmatpush1.msra.mxu0 0.0
        %456 = vmatprep.subr.mxu0 0.0
        %457 = vmatpush1.msra.mxu0 0.0
        %458 = vmatprep.subr.mxu0 0.0
        %459 = vmatpush1.msra.mxu0 0.0
        %460 = vmatprep.subr.mxu0 0.0
        %461 = vmatpush1.msra.mxu0 0.0
        %462 = vmatprep.mubr.f32.mxu0 0.0
        %463 = vmatmul.mubr.f32.gmra.mrb[0].mxu0 %v393
        %v464 = vpop.f32.mrb[0].mxu0
        %v465 = vadd.f32 0.0, %v464
        %v466 = vpop.f32.mrb[0].mxu0
        %467 = vdwg.mxu0
        %v468 = vsel %vm392, %v385, 0
        %v470 = vsel %vm395, %v384, 0
        %472 = vmatprep.subr.mxu0 0.0
        %473 = vmatpush1.msra.mxu0 %v470
        %474 = vmatprep.subr.mxu0 0.0
        %475 = vmatpush1.msra.mxu0 0.0
        %476 = vmatprep.subr.mxu0 0.0
        %477 = vmatpush1.msra.mxu0 0.0
        %478 = vmatprep.subr.mxu0 0.0
        %479 = vmatpush1.msra.mxu0 0.0
        %480 = vmatprep.subr.mxu0 0.0
        %481 = vmatpush1.msra.mxu0 0.0
        %482 = vmatprep.subr.mxu0 0.0
        %483 = vmatpush1.msra.mxu0 0.0
        %484 = vmatprep.subr.mxu0 0.0
        %485 = vmatpush1.msra.mxu0 0.0
        %486 = vmatprep.subr.mxu0 0.0
        %487 = vmatpush1.msra.mxu0 0.0
        %488 = vmatprep.subr.mxu0 0.0
        %489 = vmatpush1.msra.mxu0 0.0
        %490 = vmatprep.subr.mxu0 0.0
        %491 = vmatpush1.msra.mxu0 0.0
        %492 = vmatprep.subr.mxu0 0.0
        %493 = vmatpush1.msra.mxu0 0.0
        %494 = vmatprep.subr.mxu0 0.0
        %495 = vmatpush1.msra.mxu0 0.0
        %496 = vmatprep.subr.mxu0 0.0
        %497 = vmatpush1.msra.mxu0 0.0
        %498 = vmatprep.subr.mxu0 0.0
        %499 = vmatpush1.msra.mxu0 0.0
        %500 = vmatprep.subr.mxu0 0.0
        %501 = vmatpush1.msra.mxu0 0.0
        %502 = vmatprep.subr.mxu0 0.0
        %503 = vmatpush1.msra.mxu0 0.0
        %504 = vmatprep.subr.mxu0 0.0
        %505 = vmatpush1.msra.mxu0 0.0
        %506 = vmatprep.subr.mxu0 0.0
        %507 = vmatpush1.msra.mxu0 0.0
        %508 = vmatprep.subr.mxu0 0.0
        %509 = vmatpush1.msra.mxu0 0.0
        %510 = vmatprep.subr.mxu0 0.0
        %511 = vmatpush1.msra.mxu0 0.0
        %512 = vmatprep.subr.mxu0 0.0
        %513 = vmatpush1.msra.mxu0 0.0
        %514 = vmatprep.subr.mxu0 0.0
        %515 = vmatpush1.msra.mxu0 0.0
        %516 = vmatprep.subr.mxu0 0.0
        %517 = vmatpush1.msra.mxu0 0.0
        %518 = vmatprep.subr.mxu0 0.0
        %519 = vmatpush1.msra.mxu0 0.0
        %520 = vmatprep.subr.mxu0 0.0
        %521 = vmatpush1.msra.mxu0 0.0
        %522 = vmatprep.subr.mxu0 0.0
        %523 = vmatpush1.msra.mxu0 0.0
        %524 = vmatprep.subr.mxu0 0.0
        %525 = vmatpush1.msra.mxu0 0.0
        %526 = vmatprep.subr.mxu0 0.0
        %527 = vmatpush1.msra.mxu0 0.0
        %528 = vmatprep.subr.mxu0 0.0
        %529 = vmatpush1.msra.mxu0 0.0
        %530 = vmatprep.subr.mxu0 0.0
        %531 = vmatpush1.msra.mxu0 0.0
        %532 = vmatprep.subr.mxu0 0.0
        %533 = vmatpush1.msra.mxu0 0.0
        %534 = vmatprep.subr.mxu0 0.0
        %535 = vmatpush1.msra.mxu0 0.0
        %536 = vmatprep.mubr.f32.mxu0 0.0
        %537 = vmatmul.mubr.f32.gmra.mrb[0].mxu0 %v468
        %v538 = vpop.f32.mrb[0].mxu0
        %v539 = vadd.f32 %v465, %v538
        %v540 = vpop.f32.mrb[0].mxu0
        %541 = vdwg.mxu0
        %542 = vrot.lane.b32.xlu0 %v385, 120
        %v543 = vpop.permute.xlu0 %542
        %544 = vrot.lane.b32.xlu0 %v384, 126
        %v545 = vpop.permute.xlu0 %544
        %v546 = vsel %vm392, %v543, 0
        %v548 = vsel %vm395, %v545, 0
        %550 = vmatprep.subr.mxu0 0.0
        %551 = vmatpush1.msra.mxu0 %v548
        %552 = vmatprep.subr.mxu0 0.0
        %553 = vmatpush1.msra.mxu0 0.0
        %554 = vmatprep.subr.mxu0 0.0
        %555 = vmatpush1.msra.mxu0 0.0
        %556 = vmatprep.subr.mxu0 0.0
        %557 = vmatpush1.msra.mxu0 0.0
        %558 = vmatprep.subr.mxu0 0.0
        %559 = vmatpush1.msra.mxu0 0.0
        %560 = vmatprep.subr.mxu0 0.0
        %561 = vmatpush1.msra.mxu0 0.0
        %562 = vmatprep.subr.mxu0 0.0
        %563 = vmatpush1.msra.mxu0 0.0
        %564 = vmatprep.subr.mxu0 0.0
        %565 = vmatpush1.msra.mxu0 0.0
        %566 = vmatprep.subr.mxu0 0.0
        %567 = vmatpush1.msra.mxu0 0.0
        %568 = vmatprep.subr.mxu0 0.0
        %569 = vmatpush1.msra.mxu0 0.0
        %570 = vmatprep.subr.mxu0 0.0
        %571 = vmatpush1.msra.mxu0 0.0
        %572 = vmatprep.subr.mxu0 0.0
        %573 = vmatpush1.msra.mxu0 0.0
        %574 = vmatprep.subr.mxu0 0.0
        %575 = vmatpush1.msra.mxu0 0.0
        %576 = vmatprep.subr.mxu0 0.0
        %577 = vmatpush1.msra.mxu0 0.0
        %578 = vmatprep.subr.mxu0 0.0
        %579 = vmatpush1.msra.mxu0 0.0
        %580 = vmatprep.subr.mxu0 0.0
        %581 = vmatpush1.msra.mxu0 0.0
        %582 = vmatprep.subr.mxu0 0.0
        %583 = vmatpush1.msra.mxu0 0.0
        %584 = vmatprep.subr.mxu0 0.0
        %585 = vmatpush1.msra.mxu0 0.0
        %586 = vmatprep.subr.mxu0 0.0
        %587 = vmatpush1.msra.mxu0 0.0
        %588 = vmatprep.subr.mxu0 0.0
        %589 = vmatpush1.msra.mxu0 0.0
        %590 = vmatprep.subr.mxu0 0.0
        %591 = vmatpush1.msra.mxu0 0.0
        %592 = vmatprep.subr.mxu0 0.0
        %593 = vmatpush1.msra.mxu0 0.0
        %594 = vmatprep.subr.mxu0 0.0
        %595 = vmatpush1.msra.mxu0 0.0
        %596 = vmatprep.subr.mxu0 0.0
        %597 = vmatpush1.msra.mxu0 0.0
        %598 = vmatprep.subr.mxu0 0.0
        %599 = vmatpush1.msra.mxu0 0.0
        %600 = vmatprep.subr.mxu0 0.0
        %601 = vmatpush1.msra.mxu0 0.0
        %602 = vmatprep.subr.mxu0 0.0
        %603 = vmatpush1.msra.mxu0 0.0
        %604 = vmatprep.subr.mxu0 0.0
        %605 = vmatpush1.msra.mxu0 0.0
        %606 = vmatprep.subr.mxu0 0.0
        %607 = vmatpush1.msra.mxu0 0.0
        %608 = vmatprep.subr.mxu0 0.0
        %609 = vmatpush1.msra.mxu0 0.0
        %610 = vmatprep.subr.mxu0 0.0
        %611 = vmatpush1.msra.mxu0 0.0
        %612 = vmatprep.subr.mxu0 0.0
        %613 = vmatpush1.msra.mxu0 0.0
        %614 = vmatprep.mubr.f32.mxu0 0.0
        %615 = vmatmul.mubr.f32.gmra.mrb[0].mxu0 %v546
        %v616 = vpop.f32.mrb[0].mxu0
        %v617 = vadd.f32 0.0, %v616
        %v618 = vpop.f32.mrb[0].mxu0
        %619 = vdwg.mxu0
        %v620 = vadd.f32 %v539, %v617
        %621 = vrot.lane.b32.xlu0 %v385, 116
        %v622 = vpop.permute.xlu0 %621
        %623 = vrot.lane.b32.xlu0 %v384, 118
        %v624 = vpop.permute.xlu0 %623
        %v625 = vsel %vm392, %v622, 0
        %v627 = vsel %vm395, %v624, 0
        %629 = vmatprep.subr.mxu0 0.0
        %630 = vmatpush1.msra.mxu0 %v627
        %631 = vmatprep.subr.mxu0 0.0
        %632 = vmatpush1.msra.mxu0 0.0
        %633 = vmatprep.subr.mxu0 0.0
        %634 = vmatpush1.msra.mxu0 0.0
        %635 = vmatprep.subr.mxu0 0.0
        %636 = vmatpush1.msra.mxu0 0.0
        %637 = vmatprep.subr.mxu0 0.0
        %638 = vmatpush1.msra.mxu0 0.0
        %639 = vmatprep.subr.mxu0 0.0
        %640 = vmatpush1.msra.mxu0 0.0
        %641 = vmatprep.subr.mxu0 0.0
        %642 = vmatpush1.msra.mxu0 0.0
        %643 = vmatprep.subr.mxu0 0.0
        %644 = vmatpush1.msra.mxu0 0.0
        %645 = vmatprep.subr.mxu0 0.0
        %646 = vmatpush1.msra.mxu0 0.0
        %647 = vmatprep.subr.mxu0 0.0
        %648 = vmatpush1.msra.mxu0 0.0
        %649 = vmatprep.subr.mxu0 0.0
        %650 = vmatpush1.msra.mxu0 0.0
        %651 = vmatprep.subr.mxu0 0.0
        %652 = vmatpush1.msra.mxu0 0.0
        %653 = vmatprep.subr.mxu0 0.0
        %654 = vmatpush1.msra.mxu0 0.0
        %655 = vmatprep.subr.mxu0 0.0
        %656 = vmatpush1.msra.mxu0 0.0
        %657 = vmatprep.subr.mxu0 0.0
        %658 = vmatpush1.msra.mxu0 0.0
        %659 = vmatprep.subr.mxu0 0.0
        %660 = vmatpush1.msra.mxu0 0.0
        %661 = vmatprep.subr.mxu0 0.0
        %662 = vmatpush1.msra.mxu0 0.0
        %663 = vmatprep.subr.mxu0 0.0
        %664 = vmatpush1.msra.mxu0 0.0
        %665 = vmatprep.subr.mxu0 0.0
        %666 = vmatpush1.msra.mxu0 0.0
        %667 = vmatprep.subr.mxu0 0.0
        %668 = vmatpush1.msra.mxu0 0.0
        %669 = vmatprep.subr.mxu0 0.0
        %670 = vmatpush1.msra.mxu0 0.0
        %671 = vmatprep.subr.mxu0 0.0
        %672 = vmatpush1.msra.mxu0 0.0
        %673 = vmatprep.subr.mxu0 0.0
        %674 = vmatpush1.msra.mxu0 0.0
        %675 = vmatprep.subr.mxu0 0.0
        %676 = vmatpush1.msra.mxu0 0.0
        %677 = vmatprep.subr.mxu0 0.0
        %678 = vmatpush1.msra.mxu0 0.0
        %679 = vmatprep.subr.mxu0 0.0
        %680 = vmatpush1.msra.mxu0 0.0
        %681 = vmatprep.subr.mxu0 0.0
        %682 = vmatpush1.msra.mxu0 0.0
        %683 = vmatprep.subr.mxu0 0.0
        %684 = vmatpush1.msra.mxu0 0.0
        %685 = vmatprep.subr.mxu0 0.0
        %686 = vmatpush1.msra.mxu0 0.0
        %687 = vmatprep.subr.mxu0 0.0
        %688 = vmatpush1.msra.mxu0 0.0
        %689 = vmatprep.subr.mxu0 0.0
        %690 = vmatpush1.msra.mxu0 0.0
        %691 = vmatprep.subr.mxu0 0.0
        %692 = vmatpush1.msra.mxu0 0.0
        %693 = vmatprep.mubr.f32.mxu0 0.0
        %694 = vmatmul.mubr.f32.gmra.mrb[0].mxu0 %v625
        %v695 = vpop.f32.mrb[0].mxu0
        %v696 = vadd.f32 0.0, %v695
        %v697 = vpop.f32.mrb[0].mxu0
        %698 = vdwg.mxu0
        %v699 = vadd.f32 %v620, %v696
        %700 = vrot.lane.b32.xlu0 %v385, 112
        %v701 = vpop.permute.xlu0 %700
        %702 = vrot.lane.b32.xlu0 %v384, 117
        %v703 = vpop.permute.xlu0 %702
        %v704 = vsel %vm392, %v701, 0
        %v706 = vsel %vm395, %v703, 0
        %708 = vmatprep.subr.mxu0 0.0
        %709 = vmatpush1.msra.mxu0 %v706
        %710 = vmatprep.subr.mxu0 0.0
        %711 = vmatpush1.msra.mxu0 0.0
        %712 = vmatprep.subr.mxu0 0.0
        %713 = vmatpush1.msra.mxu0 0.0
        %714 = vmatprep.subr.mxu0 0.0
        %715 = vmatpush1.msra.mxu0 0.0
        %716 = vmatprep.subr.mxu0 0.0
        %717 = vmatpush1.msra.mxu0 0.0
        %718 = vmatprep.subr.mxu0 0.0
        %719 = vmatpush1.msra.mxu0 0.0
        %720 = vmatprep.subr.mxu0 0.0
        %721 = vmatpush1.msra.mxu0 0.0
        %722 = vmatprep.subr.mxu0 0.0
        %723 = vmatpush1.msra.mxu0 0.0
        %724 = vmatprep.subr.mxu0 0.0
        %725 = vmatpush1.msra.mxu0 0.0
        %726 = vmatprep.subr.mxu0 0.0
        %727 = vmatpush1.msra.mxu0 0.0
        %728 = vmatprep.subr.mxu0 0.0
        %729 = vmatpush1.msra.mxu0 0.0
        %730 = vmatprep.subr.mxu0 0.0
        %731 = vmatpush1.msra.mxu0 0.0
        %732 = vmatprep.subr.mxu0 0.0
        %733 = vmatpush1.msra.mxu0 0.0
        %734 = vmatprep.subr.mxu0 0.0
        %735 = vmatpush1.msra.mxu0 0.0
        %736 = vmatprep.subr.mxu0 0.0
        %737 = vmatpush1.msra.mxu0 0.0
        %738 = vmatprep.subr.mxu0 0.0
        %739 = vmatpush1.msra.mxu0 0.0
        %740 = vmatprep.subr.mxu0 0.0
        %741 = vmatpush1.msra.mxu0 0.0
        %742 = vmatprep.subr.mxu0 0.0
        %743 = vmatpush1.msra.mxu0 0.0
        %744 = vmatprep.subr.mxu0 0.0
        %745 = vmatpush1.msra.mxu0 0.0
        %746 = vmatprep.subr.mxu0 0.0
        %747 = vmatpush1.msra.mxu0 0.0
        %748 = vmatprep.subr.mxu0 0.0
        %749 = vmatpush1.msra.mxu0 0.0
        %750 = vmatprep.subr.mxu0 0.0
        %751 = vmatpush1.msra.mxu0 0.0
        %752 = vmatprep.subr.mxu0 0.0
        %753 = vmatpush1.msra.mxu0 0.0
        %754 = vmatprep.subr.mxu0 0.0
        %755 = vmatpush1.msra.mxu0 0.0
        %756 = vmatprep.subr.mxu0 0.0
        %757 = vmatpush1.msra.mxu0 0.0
        %758 = vmatprep.subr.mxu0 0.0
        %759 = vmatpush1.msra.mxu0 0.0
        %760 = vmatprep.subr.mxu0 0.0
        %761 = vmatpush1.msra.mxu0 0.0
        %762 = vmatprep.subr.mxu0 0.0
        %763 = vmatpush1.msra.mxu0 0.0
        %764 = vmatprep.subr.mxu0 0.0
        %765 = vmatpush1.msra.mxu0 0.0
        %766 = vmatprep.subr.mxu0 0.0
        %767 = vmatpush1.msra.mxu0 0.0
        %768 = vmatprep.subr.mxu0 0.0
        %769 = vmatpush1.msra.mxu0 0.0
        %770 = vmatprep.subr.mxu0 0.0
        %771 = vmatpush1.msra.mxu0 0.0
        %772 = vmatprep.mubr.f32.mxu0 0.0
        %773 = vmatmul.mubr.f32.gmra.mrb[0].mxu0 %v704
        %v774 = vpop.f32.mrb[0].mxu0
        %v775 = vadd.f32 0.0, %v774
        %v776 = vpop.f32.mrb[0].mxu0
        %777 = vdwg.mxu0
        %v778 = vadd.f32 %v699, %v775
        %779 = vrot.lane.b32.xlu0 %v385, 108
        %v780 = vpop.permute.xlu0 %779
        %781 = vrot.lane.b32.xlu0 %v384, 116
        %v782 = vpop.permute.xlu0 %781
        %v783 = vsel %vm392, %v780, 0
        %v785 = vsel %vm395, %v782, 0
        %787 = vmatprep.subr.mxu0 0.0
        %788 = vmatpush1.msra.mxu0 %v785
        %789 = vmatprep.subr.mxu0 0.0
        %790 = vmatpush1.msra.mxu0 0.0
        %791 = vmatprep.subr.mxu0 0.0
        %792 = vmatpush1.msra.mxu0 0.0
        %793 = vmatprep.subr.mxu0 0.0
        %794 = vmatpush1.msra.mxu0 0.0
        %795 = vmatprep.subr.mxu0 0.0
        %796 = vmatpush1.msra.mxu0 0.0
        %797 = vmatprep.subr.mxu0 0.0
        %798 = vmatpush1.msra.mxu0 0.0
        %799 = vmatprep.subr.mxu0 0.0
        %800 = vmatpush1.msra.mxu0 0.0
        %801 = vmatprep.subr.mxu0 0.0
        %802 = vmatpush1.msra.mxu0 0.0
        %803 = vmatprep.subr.mxu0 0.0
        %804 = vmatpush1.msra.mxu0 0.0
        %805 = vmatprep.subr.mxu0 0.0
        %806 = vmatpush1.msra.mxu0 0.0
        %807 = vmatprep.subr.mxu0 0.0
        %808 = vmatpush1.msra.mxu0 0.0
        %809 = vmatprep.subr.mxu0 0.0
        %810 = vmatpush1.msra.mxu0 0.0
        %811 = vmatprep.subr.mxu0 0.0
        %812 = vmatpush1.msra.mxu0 0.0
        %813 = vmatprep.subr.mxu0 0.0
        %814 = vmatpush1.msra.mxu0 0.0
        %815 = vmatprep.subr.mxu0 0.0
        %816 = vmatpush1.msra.mxu0 0.0
        %817 = vmatprep.subr.mxu0 0.0
        %818 = vmatpush1.msra.mxu0 0.0
        %819 = vmatprep.subr.mxu0 0.0
        %820 = vmatpush1.msra.mxu0 0.0
        %821 = vmatprep.subr.mxu0 0.0
        %822 = vmatpush1.msra.mxu0 0.0
        %823 = vmatprep.subr.mxu0 0.0
        %824 = vmatpush1.msra.mxu0 0.0
        %825 = vmatprep.subr.mxu0 0.0
        %826 = vmatpush1.msra.mxu0 0.0
        %827 = vmatprep.subr.mxu0 0.0
        %828 = vmatpush1.msra.mxu0 0.0
        %829 = vmatprep.subr.mxu0 0.0
        %830 = vmatpush1.msra.mxu0 0.0
        %831 = vmatprep.subr.mxu0 0.0
        %832 = vmatpush1.msra.mxu0 0.0
        %833 = vmatprep.subr.mxu0 0.0
        %834 = vmatpush1.msra.mxu0 0.0
        %835 = vmatprep.subr.mxu0 0.0
        %836 = vmatpush1.msra.mxu0 0.0
        %837 = vmatprep.subr.mxu0 0.0
        %838 = vmatpush1.msra.mxu0 0.0
        %839 = vmatprep.subr.mxu0 0.0
        %840 = vmatpush1.msra.mxu0 0.0
        %841 = vmatprep.subr.mxu0 0.0
        %842 = vmatpush1.msra.mxu0 0.0
        %843 = vmatprep.subr.mxu0 0.0
        %844 = vmatpush1.msra.mxu0 0.0
        %845 = vmatprep.subr.mxu0 0.0
        %846 = vmatpush1.msra.mxu0 0.0
        %847 = vmatprep.subr.mxu0 0.0
        %848 = vmatpush1.msra.mxu0 0.0
        %849 = vmatprep.subr.mxu0 0.0
        %850 = vmatpush1.msra.mxu0 0.0
        %851 = vmatprep.mubr.f32.mxu0 0.0
        %852 = vmatmul.mubr.f32.gmra.mrb[0].mxu0 %v783
        %v853 = vpop.f32.mrb[0].mxu0
        %v854 = vadd.f32 0.0, %v853
        %v855 = vpop.f32.mrb[0].mxu0
        %856 = vdwg.mxu0
        %v857 = vadd.f32 %v778, %v854
        %858 = vrot.lane.b32.xlu0 %v385, 104
        %v859 = vpop.permute.xlu0 %858
        %860 = vrot.lane.b32.xlu0 %v384, 108
        %v861 = vpop.permute.xlu0 %860
        %v862 = vsel %vm392, %v859, 0
        %v864 = vsel %vm395, %v861, 0
        %866 = vmatprep.subr.mxu0 0.0
        %867 = vmatpush1.msra.mxu0 %v864
        %868 = vmatprep.subr.mxu0 0.0
        %869 = vmatpush1.msra.mxu0 0.0
        %870 = vmatprep.subr.mxu0 0.0
        %871 = vmatpush1.msra.mxu0 0.0
        %872 = vmatprep.subr.mxu0 0.0
        %873 = vmatpush1.msra.mxu0 0.0
        %874 = vmatprep.subr.mxu0 0.0
        %875 = vmatpush1.msra.mxu0 0.0
        %876 = vmatprep.subr.mxu0 0.0
        %877 = vmatpush1.msra.mxu0 0.0
        %878 = vmatprep.subr.mxu0 0.0
        %879 = vmatpush1.msra.mxu0 0.0
        %880 = vmatprep.subr.mxu0 0.0
        %881 = vmatpush1.msra.mxu0 0.0
        %882 = vmatprep.subr.mxu0 0.0
        %883 = vmatpush1.msra.mxu0 0.0
        %884 = vmatprep.subr.mxu0 0.0
        %885 = vmatpush1.msra.mxu0 0.0
        %886 = vmatprep.subr.mxu0 0.0
        %887 = vmatpush1.msra.mxu0 0.0
        %888 = vmatprep.subr.mxu0 0.0
        %889 = vmatpush1.msra.mxu0 0.0
        %890 = vmatprep.subr.mxu0 0.0
        %891 = vmatpush1.msra.mxu0 0.0
        %892 = vmatprep.subr.mxu0 0.0
        %893 = vmatpush1.msra.mxu0 0.0
        %894 = vmatprep.subr.mxu0 0.0
        %895 = vmatpush1.msra.mxu0 0.0
        %896 = vmatprep.subr.mxu0 0.0
        %897 = vmatpush1.msra.mxu0 0.0
        %898 = vmatprep.subr.mxu0 0.0
        %899 = vmatpush1.msra.mxu0 0.0
        %900 = vmatprep.subr.mxu0 0.0
        %901 = vmatpush1.msra.mxu0 0.0
        %902 = vmatprep.subr.mxu0 0.0
        %903 = vmatpush1.msra.mxu0 0.0
        %904 = vmatprep.subr.mxu0 0.0
        %905 = vmatpush1.msra.mxu0 0.0
        %906 = vmatprep.subr.mxu0 0.0
        %907 = vmatpush1.msra.mxu0 0.0
        %908 = vmatprep.subr.mxu0 0.0
        %909 = vmatpush1.msra.mxu0 0.0
        %910 = vmatprep.subr.mxu0 0.0
        %911 = vmatpush1.msra.mxu0 0.0
        %912 = vmatprep.subr.mxu0 0.0
        %913 = vmatpush1.msra.mxu0 0.0
        %914 = vmatprep.subr.mxu0 0.0
        %915 = vmatpush1.msra.mxu0 0.0
        %916 = vmatprep.subr.mxu0 0.0
        %917 = vmatpush1.msra.mxu0 0.0
        %918 = vmatprep.subr.mxu0 0.0
        %919 = vmatpush1.msra.mxu0 0.0
        %920 = vmatprep.subr.mxu0 0.0
        %921 = vmatpush1.msra.mxu0 0.0
        %922 = vmatprep.subr.mxu0 0.0
        %923 = vmatpush1.msra.mxu0 0.0
        %924 = vmatprep.subr.mxu0 0.0
        %925 = vmatpush1.msra.mxu0 0.0
        %926 = vmatprep.subr.mxu0 0.0
        %927 = vmatpush1.msra.mxu0 0.0
        %928 = vmatprep.subr.mxu0 0.0
        %929 = vmatpush1.msra.mxu0 0.0
        %930 = vmatprep.mubr.f32.mxu0 0.0
        %931 = vmatmul.mubr.f32.gmra.mrb[0].mxu0 %v862
        %v932 = vpop.f32.mrb[0].mxu0
        %v933 = vadd.f32 0.0, %v932
        %v934 = vpop.f32.mrb[0].mxu0
        %935 = vdwg.mxu0
        %v936 = vadd.f32 %v857, %v933
        %937 = vrot.lane.b32.xlu0 %v385, 100
        %v938 = vpop.permute.xlu0 %937
        %939 = vrot.lane.b32.xlu0 %v384, 107
        %v940 = vpop.permute.xlu0 %939
        %v941 = vsel %vm392, %v938, 0
        %v943 = vsel %vm395, %v940, 0
        %945 = vmatprep.subr.mxu0 0.0
        %946 = vmatpush1.msra.mxu0 %v943
        %947 = vmatprep.subr.mxu0 0.0
        %948 = vmatpush1.msra.mxu0 0.0
        %949 = vmatprep.subr.mxu0 0.0
        %950 = vmatpush1.msra.mxu0 0.0
        %951 = vmatprep.subr.mxu0 0.0
        %952 = vmatpush1.msra.mxu0 0.0
        %953 = vmatprep.subr.mxu0 0.0
        %954 = vmatpush1.msra.mxu0 0.0
        %955 = vmatprep.subr.mxu0 0.0
        %956 = vmatpush1.msra.mxu0 0.0
        %957 = vmatprep.subr.mxu0 0.0
        %958 = vmatpush1.msra.mxu0 0.0
        %959 = vmatprep.subr.mxu0 0.0
        %960 = vmatpush1.msra.mxu0 0.0
        %961 = vmatprep.subr.mxu0 0.0
        %962 = vmatpush1.msra.mxu0 0.0
        %963 = vmatprep.subr.mxu0 0.0
        %964 = vmatpush1.msra.mxu0 0.0
        %965 = vmatprep.subr.mxu0 0.0
        %966 = vmatpush1.msra.mxu0 0.0
        %967 = vmatprep.subr.mxu0 0.0
        %968 = vmatpush1.msra.mxu0 0.0
        %969 = vmatprep.subr.mxu0 0.0
        %970 = vmatpush1.msra.mxu0 0.0
        %971 = vmatprep.subr.mxu0 0.0
        %972 = vmatpush1.msra.mxu0 0.0
        %973 = vmatprep.subr.mxu0 0.0
        %974 = vmatpush1.msra.mxu0 0.0
        %975 = vmatprep.subr.mxu0 0.0
        %976 = vmatpush1.msra.mxu0 0.0
        %977 = vmatprep.subr.mxu0 0.0
        %978 = vmatpush1.msra.mxu0 0.0
        %979 = vmatprep.subr.mxu0 0.0
        %980 = vmatpush1.msra.mxu0 0.0
        %981 = vmatprep.subr.mxu0 0.0
        %982 = vmatpush1.msra.mxu0 0.0
        %983 = vmatprep.subr.mxu0 0.0
        %984 = vmatpush1.msra.mxu0 0.0
        %985 = vmatprep.subr.mxu0 0.0
        %986 = vmatpush1.msra.mxu0 0.0
        %987 = vmatprep.subr.mxu0 0.0
        %988 = vmatpush1.msra.mxu0 0.0
        %989 = vmatprep.subr.mxu0 0.0
        %990 = vmatpush1.msra.mxu0 0.0
        %991 = vmatprep.subr.mxu0 0.0
        %992 = vmatpush1.msra.mxu0 0.0
        %993 = vmatprep.subr.mxu0 0.0
        %994 = vmatpush1.msra.mxu0 0.0
        %995 = vmatprep.subr.mxu0 0.0
        %996 = vmatpush1.msra.mxu0 0.0
        %997 = vmatprep.subr.mxu0 0.0
        %998 = vmatpush1.msra.mxu0 0.0
        %999 = vmatprep.subr.mxu0 0.0
        %1000 = vmatpush1.msra.mxu0 0.0
        %1001 = vmatprep.subr.mxu0 0.0
        %1002 = vmatpush1.msra.mxu0 0.0
        %1003 = vmatprep.subr.mxu0 0.0
        %1004 = vmatpush1.msra.mxu0 0.0
        %1005 = vmatprep.subr.mxu0 0.0
        %1006 = vmatpush1.msra.mxu0 0.0
        %1007 = vmatprep.subr.mxu0 0.0
        %1008 = vmatpush1.msra.mxu0 0.0
        %1009 = vmatprep.mubr.f32.mxu0 0.0
        %1010 = vmatmul.mubr.f32.gmra.mrb[0].mxu0 %v941
        %v1011 = vpop.f32.mrb[0].mxu0
        %v1012 = vadd.f32 0.0, %v1011
        %v1013 = vpop.f32.mrb[0].mxu0
        %1014 = vdwg.mxu0
        %v1015 = vadd.f32 %v936, %v1012
        %1016 = vrot.lane.b32.xlu0 %v385, 96
        %v1017 = vpop.permute.xlu0 %1016
        %1018 = vrot.lane.b32.xlu0 %v384, 106
        %v1019 = vpop.permute.xlu0 %1018
        %v1020 = vsel %vm392, %v1017, 0
        %v1022 = vsel %vm395, %v1019, 0
        %1024 = vmatprep.subr.mxu0 0.0
        %1025 = vmatpush1.msra.mxu0 %v1022
        %1026 = vmatprep.subr.mxu0 0.0
        %1027 = vmatpush1.msra.mxu0 0.0
        %1028 = vmatprep.subr.mxu0 0.0
        %1029 = vmatpush1.msra.mxu0 0.0
        %1030 = vmatprep.subr.mxu0 0.0
        %1031 = vmatpush1.msra.mxu0 0.0
        %1032 = vmatprep.subr.mxu0 0.0
        %1033 = vmatpush1.msra.mxu0 0.0
        %1034 = vmatprep.subr.mxu0 0.0
        %1035 = vmatpush1.msra.mxu0 0.0
        %1036 = vmatprep.subr.mxu0 0.0
        %1037 = vmatpush1.msra.mxu0 0.0
        %1038 = vmatprep.subr.mxu0 0.0
        %1039 = vmatpush1.msra.mxu0 0.0
        %1040 = vmatprep.subr.mxu0 0.0
        %1041 = vmatpush1.msra.mxu0 0.0
        %1042 = vmatprep.subr.mxu0 0.0
        %1043 = vmatpush1.msra.mxu0 0.0
        %1044 = vmatprep.subr.mxu0 0.0
        %1045 = vmatpush1.msra.mxu0 0.0
        %1046 = vmatprep.subr.mxu0 0.0
        %1047 = vmatpush1.msra.mxu0 0.0
        %1048 = vmatprep.subr.mxu0 0.0
        %1049 = vmatpush1.msra.mxu0 0.0
        %1050 = vmatprep.subr.mxu0 0.0
        %1051 = vmatpush1.msra.mxu0 0.0
        %1052 = vmatprep.subr.mxu0 0.0
        %1053 = vmatpush1.msra.mxu0 0.0
        %1054 = vmatprep.subr.mxu0 0.0
        %1055 = vmatpush1.msra.mxu0 0.0
        %1056 = vmatprep.subr.mxu0 0.0
        %1057 = vmatpush1.msra.mxu0 0.0
        %1058 = vmatprep.subr.mxu0 0.0
        %1059 = vmatpush1.msra.mxu0 0.0
        %1060 = vmatprep.subr.mxu0 0.0
        %1061 = vmatpush1.msra.mxu0 0.0
        %1062 = vmatprep.subr.mxu0 0.0
        %1063 = vmatpush1.msra.mxu0 0.0
        %1064 = vmatprep.subr.mxu0 0.0
        %1065 = vmatpush1.msra.mxu0 0.0
        %1066 = vmatprep.subr.mxu0 0.0
        %1067 = vmatpush1.msra.mxu0 0.0
        %1068 = vmatprep.subr.mxu0 0.0
        %1069 = vmatpush1.msra.mxu0 0.0
        %1070 = vmatprep.subr.mxu0 0.0
        %1071 = vmatpush1.msra.mxu0 0.0
        %1072 = vmatprep.subr.mxu0 0.0
        %1073 = vmatpush1.msra.mxu0 0.0
        %1074 = vmatprep.subr.mxu0 0.0
        %1075 = vmatpush1.msra.mxu0 0.0
        %1076 = vmatprep.subr.mxu0 0.0
        %1077 = vmatpush1.msra.mxu0 0.0
        %1078 = vmatprep.subr.mxu0 0.0
        %1079 = vmatpush1.msra.mxu0 0.0
        %1080 = vmatprep.subr.mxu0 0.0
        %1081 = vmatpush1.msra.mxu0 0.0
        %1082 = vmatprep.subr.mxu0 0.0
        %1083 = vmatpush1.msra.mxu0 0.0
        %1084 = vmatprep.subr.mxu0 0.0
        %1085 = vmatpush1.msra.mxu0 0.0
        %1086 = vmatprep.subr.mxu0 0.0
        %1087 = vmatpush1.msra.mxu0 0.0
        %1088 = vmatprep.mubr.f32.mxu0 0.0
        %1089 = vmatmul.mubr.f32.gmra.mrb[0].mxu0 %v1020
        %v1090 = vpop.f32.mrb[0].mxu0
        %v1091 = vadd.f32 0.0, %v1090
        %v1092 = vpop.f32.mrb[0].mxu0
        %1093 = vdwg.mxu0
        %v1094 = vadd.f32 %v1015, %v1091
        %v1095 = vmax.f32 %v1094, 0.0
        %vm1096 = vcmask 998400
        %1097 = vst.msk [vmem:[#allocation3] sm:$0xff] %vm1096, 0.0
        %v1098 = vld [vmem:[%s4] sm:$0x1]
        %v1100 = vlaneseq
        %v1101 = vshrl.u32 %v1100, 7
        %v1102 = vsub.s32 0, %v1101
        %v1103 = vrot.slane %v1098, %v1102
        %v1105 = vmul.f32 %v1095, %v1103
        %1107 = vrot.lane.b32.xlu0 %v1105, 11
        %v1108 = vpop.permute.xlu0 %1107
        %vm1110 = vcmask 908376
        %1111 = vst.msk [vmem:[#allocation3] sm:$0xff] %vm1110, %v1108
        %v1112 = vld [vmem:[#allocation3] sm:$0xff]
        %v1113 = vld [vmem:[%s2] sm:$0xff]
        %1115 = vrot.lane.b32.xlu0 %v1113, 120
        %v1116 = vpop.permute.xlu0 %1115
        %1118 = vrot.lane.b32.xlu0 %v1112, 127
        %v1119 = vpop.permute.xlu0 %1118
        %vm1121 = vcmask 64512
        %v1122 = vsel %vm1121, %v1116, 0
        %1124 = vmatprep.subr.mxu0 0.0
        %1125 = vmatpush1.msra.mxu0 %v1119
        %1126 = vmatprep.subr.mxu0 0.0
        %1127 = vmatpush1.msra.mxu0 0.0
        %1128 = vmatprep.subr.mxu0 0.0
        %1129 = vmatpush1.msra.mxu0 0.0
        %1130 = vmatprep.subr.mxu0 0.0
        %1131 = vmatpush1.msra.mxu0 0.0
        %1132 = vmatprep.subr.mxu0 0.0
        %1133 = vmatpush1.msra.mxu0 0.0
        %1134 = vmatprep.subr.mxu0 0.0
        %1135 = vmatpush1.msra.mxu0 0.0
        %1136 = vmatprep.subr.mxu0 0.0
        %1137 = vmatpush1.msra.mxu0 0.0
        %1138 = vmatprep.subr.mxu0 0.0
        %1139 = vmatpush1.msra.mxu0 0.0
        %1140 = vmatprep.subr.mxu0 0.0
        %1141 = vmatpush1.msra.mxu0 0.0
        %1142 = vmatprep.subr.mxu0 0.0
        %1143 = vmatpush1.msra.mxu0 0.0
        %1144 = vmatprep.subr.mxu0 0.0
        %1145 = vmatpush1.msra.mxu0 0.0
        %1146 = vmatprep.subr.mxu0 0.0
        %1147 = vmatpush1.msra.mxu0 0.0
        %1148 = vmatprep.subr.mxu0 0.0
        %1149 = vmatpush1.msra.mxu0 0.0
        %1150 = vmatprep.subr.mxu0 0.0
        %1151 = vmatpush1.msra.mxu0 0.0
        %1152 = vmatprep.subr.mxu0 0.0
        %1153 = vmatpush1.msra.mxu0 0.0
        %1154 = vmatprep.subr.mxu0 0.0
        %1155 = vmatpush1.msra.mxu0 0.0
        %1156 = vmatprep.subr.mxu0 0.0
        %1157 = vmatpush1.msra.mxu0 0.0
        %1158 = vmatprep.subr.mxu0 0.0
        %1159 = vmatpush1.msra.mxu0 0.0
        %1160 = vmatprep.subr.mxu0 0.0
        %1161 = vmatpush1.msra.mxu0 0.0
        %1162 = vmatprep.subr.mxu0 0.0
        %1163 = vmatpush1.msra.mxu0 0.0
        %1164 = vmatprep.subr.mxu0 0.0
        %1165 = vmatpush1.msra.mxu0 0.0
        %1166 = vmatprep.subr.mxu0 0.0
        %1167 = vmatpush1.msra.mxu0 0.0
        %1168 = vmatprep.subr.mxu0 0.0
        %1169 = vmatpush1.msra.mxu0 0.0
        %1170 = vmatprep.subr.mxu0 0.0
        %1171 = vmatpush1.msra.mxu0 0.0
        %1172 = vmatprep.subr.mxu0 0.0
        %1173 = vmatpush1.msra.mxu0 0.0
        %1174 = vmatprep.subr.mxu0 0.0
        %1175 = vmatpush1.msra.mxu0 0.0
        %1176 = vmatprep.subr.mxu0 0.0
        %1177 = vmatpush1.msra.mxu0 0.0
        %1178 = vmatprep.subr.mxu0 0.0
        %1179 = vmatpush1.msra.mxu0 0.0
        %1180 = vmatprep.subr.mxu0 0.0
        %1181 = vmatpush1.msra.mxu0 0.0
        %1182 = vmatprep.subr.mxu0 0.0
        %1183 = vmatpush1.msra.mxu0 0.0
        %1184 = vmatprep.subr.mxu0 0.0
        %1185 = vmatpush1.msra.mxu0 0.0
        %1186 = vmatprep.subr.mxu0 0.0
        %1187 = vmatpush1.msra.mxu0 0.0
        %1188 = vmatprep.mubr.f32.mxu0 0.0
        %1189 = vmatmul.mubr.f32.gmra.mrb[0].mxu0 %v1122
        %v1190 = vpop.f32.mrb[0].mxu0
        %v1191 = vadd.f32 0.0, %v1190
        %v1192 = vpop.f32.mrb[0].mxu0
        %1193 = vdwg.mxu0
        %v1194 = vsel %vm1121, %v1113, 0
        %1196 = vmatprep.subr.mxu0 0.0
        %1197 = vmatpush1.msra.mxu0 %v1112
        %1198 = vmatprep.subr.mxu0 0.0
        %1199 = vmatpush1.msra.mxu0 0.0
        %1200 = vmatprep.subr.mxu0 0.0
        %1201 = vmatpush1.msra.mxu0 0.0
        %1202 = vmatprep.subr.mxu0 0.0
        %1203 = vmatpush1.msra.mxu0 0.0
        %1204 = vmatprep.subr.mxu0 0.0
        %1205 = vmatpush1.msra.mxu0 0.0
        %1206 = vmatprep.subr.mxu0 0.0
        %1207 = vmatpush1.msra.mxu0 0.0
        %1208 = vmatprep.subr.mxu0 0.0
        %1209 = vmatpush1.msra.mxu0 0.0
        %1210 = vmatprep.subr.mxu0 0.0
        %1211 = vmatpush1.msra.mxu0 0.0
        %1212 = vmatprep.subr.mxu0 0.0
        %1213 = vmatpush1.msra.mxu0 0.0
        %1214 = vmatprep.subr.mxu0 0.0
        %1215 = vmatpush1.msra.mxu0 0.0
        %1216 = vmatprep.subr.mxu0 0.0
        %1217 = vmatpush1.msra.mxu0 0.0
        %1218 = vmatprep.subr.mxu0 0.0
        %1219 = vmatpush1.msra.mxu0 0.0
        %1220 = vmatprep.subr.mxu0 0.0
        %1221 = vmatpush1.msra.mxu0 0.0
        %1222 = vmatprep.subr.mxu0 0.0
        %1223 = vmatpush1.msra.mxu0 0.0
        %1224 = vmatprep.subr.mxu0 0.0
        %1225 = vmatpush1.msra.mxu0 0.0
        %1226 = vmatprep.subr.mxu0 0.0
        %1227 = vmatpush1.msra.mxu0 0.0
        %1228 = vmatprep.subr.mxu0 0.0
        %1229 = vmatpush1.msra.mxu0 0.0
        %1230 = vmatprep.subr.mxu0 0.0
        %1231 = vmatpush1.msra.mxu0 0.0
        %1232 = vmatprep.subr.mxu0 0.0
        %1233 = vmatpush1.msra.mxu0 0.0
        %1234 = vmatprep.subr.mxu0 0.0
        %1235 = vmatpush1.msra.mxu0 0.0
        %1236 = vmatprep.subr.mxu0 0.0
        %1237 = vmatpush1.msra.mxu0 0.0
        %1238 = vmatprep.subr.mxu0 0.0
        %1239 = vmatpush1.msra.mxu0 0.0
        %1240 = vmatprep.subr.mxu0 0.0
        %1241 = vmatpush1.msra.mxu0 0.0
        %1242 = vmatprep.subr.mxu0 0.0
        %1243 = vmatpush1.msra.mxu0 0.0
        %1244 = vmatprep.subr.mxu0 0.0
        %1245 = vmatpush1.msra.mxu0 0.0
        %1246 = vmatprep.subr.mxu0 0.0
        %1247 = vmatpush1.msra.mxu0 0.0
        %1248 = vmatprep.subr.mxu0 0.0
        %1249 = vmatpush1.msra.mxu0 0.0
        %1250 = vmatprep.subr.mxu0 0.0
        %1251 = vmatpush1.msra.mxu0 0.0
        %1252 = vmatprep.subr.mxu0 0.0
        %1253 = vmatpush1.msra.mxu0 0.0
        %1254 = vmatprep.subr.mxu0 0.0
        %1255 = vmatpush1.msra.mxu0 0.0
        %1256 = vmatprep.subr.mxu0 0.0
        %1257 = vmatpush1.msra.mxu0 0.0
        %1258 = vmatprep.subr.mxu0 0.0
        %1259 = vmatpush1.msra.mxu0 0.0
        %1260 = vmatprep.mubr.f32.mxu0 0.0
        %1261 = vmatmul.mubr.f32.gmra.mrb[0].mxu0 %v1194
        %v1262 = vpop.f32.mrb[0].mxu0
        %v1263 = vadd.f32 %v1191, %v1262
        %v1264 = vpop.f32.mrb[0].mxu0
        %1265 = vdwg.mxu0
        %1266 = vrot.lane.b32.xlu0 %v1113, 112
        %v1267 = vpop.permute.xlu0 %1266
        %1268 = vrot.lane.b32.xlu0 %v1112, 126
        %v1269 = vpop.permute.xlu0 %1268
        %v1271 = vsel %vm1121, %v1267, 0
        %1273 = vmatprep.subr.mxu0 0.0
        %1274 = vmatpush1.msra.mxu0 %v1269
        %1275 = vmatprep.subr.mxu0 0.0
        %1276 = vmatpush1.msra.mxu0 0.0
        %1277 = vmatprep.subr.mxu0 0.0
        %1278 = vmatpush1.msra.mxu0 0.0
        %1279 = vmatprep.subr.mxu0 0.0
        %1280 = vmatpush1.msra.mxu0 0.0
        %1281 = vmatprep.subr.mxu0 0.0
        %1282 = vmatpush1.msra.mxu0 0.0
        %1283 = vmatprep.subr.mxu0 0.0
        %1284 = vmatpush1.msra.mxu0 0.0
        %1285 = vmatprep.subr.mxu0 0.0
        %1286 = vmatpush1.msra.mxu0 0.0
        %1287 = vmatprep.subr.mxu0 0.0
        %1288 = vmatpush1.msra.mxu0 0.0
        %1289 = vmatprep.subr.mxu0 0.0
        %1290 = vmatpush1.msra.mxu0 0.0
        %1291 = vmatprep.subr.mxu0 0.0
        %1292 = vmatpush1.msra.mxu0 0.0
        %1293 = vmatprep.subr.mxu0 0.0
        %1294 = vmatpush1.msra.mxu0 0.0
        %1295 = vmatprep.subr.mxu0 0.0
        %1296 = vmatpush1.msra.mxu0 0.0
        %1297 = vmatprep.subr.mxu0 0.0
        %1298 = vmatpush1.msra.mxu0 0.0
        %1299 = vmatprep.subr.mxu0 0.0
        %1300 = vmatpush1.msra.mxu0 0.0
        %1301 = vmatprep.subr.mxu0 0.0
        %1302 = vmatpush1.msra.mxu0 0.0
        %1303 = vmatprep.subr.mxu0 0.0
        %1304 = vmatpush1.msra.mxu0 0.0
        %1305 = vmatprep.subr.mxu0 0.0
        %1306 = vmatpush1.msra.mxu0 0.0
        %1307 = vmatprep.subr.mxu0 0.0
        %1308 = vmatpush1.msra.mxu0 0.0
        %1309 = vmatprep.subr.mxu0 0.0
        %1310 = vmatpush1.msra.mxu0 0.0
        %1311 = vmatprep.subr.mxu0 0.0
        %1312 = vmatpush1.msra.mxu0 0.0
        %1313 = vmatprep.subr.mxu0 0.0
        %1314 = vmatpush1.msra.mxu0 0.0
        %1315 = vmatprep.subr.mxu0 0.0
        %1316 = vmatpush1.msra.mxu0 0.0
        %1317 = vmatprep.subr.mxu0 0.0
        %1318 = vmatpush1.msra.mxu0 0.0
        %1319 = vmatprep.subr.mxu0 0.0
        %1320 = vmatpush1.msra.mxu0 0.0
        %1321 = vmatprep.subr.mxu0 0.0
        %1322 = vmatpush1.msra.mxu0 0.0
        %1323 = vmatprep.subr.mxu0 0.0
        %1324 = vmatpush1.msra.mxu0 0.0
        %1325 = vmatprep.subr.mxu0 0.0
        %1326 = vmatpush1.msra.mxu0 0.0
        %1327 = vmatprep.subr.mxu0 0.0
        %1328 = vmatpush1.msra.mxu0 0.0
        %1329 = vmatprep.subr.mxu0 0.0
        %1330 = vmatpush1.msra.mxu0 0.0
        %1331 = vmatprep.subr.mxu0 0.0
        %1332 = vmatpush1.msra.mxu0 0.0
        %1333 = vmatprep.subr.mxu0 0.0
        %1334 = vmatpush1.msra.mxu0 0.0
        %1335 = vmatprep.subr.mxu0 0.0
        %1336 = vmatpush1.msra.mxu0 0.0
        %1337 = vmatprep.mubr.f32.mxu0 0.0
        %1338 = vmatmul.mubr.f32.gmra.mrb[0].mxu0 %v1271
        %v1339 = vpop.f32.mrb[0].mxu0
        %v1340 = vadd.f32 0.0, %v1339
        %v1341 = vpop.f32.mrb[0].mxu0
        %1342 = vdwg.mxu0
        %v1343 = vadd.f32 %v1263, %v1340
        %1344 = vrot.lane.b32.xlu0 %v1113, 104
        %v1345 = vpop.permute.xlu0 %1344
        %1346 = vrot.lane.b32.xlu0 %v1112, 118
        %v1347 = vpop.permute.xlu0 %1346
        %v1349 = vsel %vm1121, %v1345, 0
        %1351 = vmatprep.subr.mxu0 0.0
        %1352 = vmatpush1.msra.mxu0 %v1347
        %1353 = vmatprep.subr.mxu0 0.0
        %1354 = vmatpush1.msra.mxu0 0.0
        %1355 = vmatprep.subr.mxu0 0.0
        %1356 = vmatpush1.msra.mxu0 0.0
        %1357 = vmatprep.subr.mxu0 0.0
        %1358 = vmatpush1.msra.mxu0 0.0
        %1359 = vmatprep.subr.mxu0 0.0
        %1360 = vmatpush1.msra.mxu0 0.0
        %1361 = vmatprep.subr.mxu0 0.0
        %1362 = vmatpush1.msra.mxu0 0.0
        %1363 = vmatprep.subr.mxu0 0.0
        %1364 = vmatpush1.msra.mxu0 0.0
        %1365 = vmatprep.subr.mxu0 0.0
        %1366 = vmatpush1.msra.mxu0 0.0
        %1367 = vmatprep.subr.mxu0 0.0
        %1368 = vmatpush1.msra.mxu0 0.0
        %1369 = vmatprep.subr.mxu0 0.0
        %1370 = vmatpush1.msra.mxu0 0.0
        %1371 = vmatprep.subr.mxu0 0.0
        %1372 = vmatpush1.msra.mxu0 0.0
        %1373 = vmatprep.subr.mxu0 0.0
        %1374 = vmatpush1.msra.mxu0 0.0
        %1375 = vmatprep.subr.mxu0 0.0
        %1376 = vmatpush1.msra.mxu0 0.0
        %1377 = vmatprep.subr.mxu0 0.0
        %1378 = vmatpush1.msra.mxu0 0.0
        %1379 = vmatprep.subr.mxu0 0.0
        %1380 = vmatpush1.msra.mxu0 0.0
        %1381 = vmatprep.subr.mxu0 0.0
        %1382 = vmatpush1.msra.mxu0 0.0
        %1383 = vmatprep.subr.mxu0 0.0
        %1384 = vmatpush1.msra.mxu0 0.0
        %1385 = vmatprep.subr.mxu0 0.0
        %1386 = vmatpush1.msra.mxu0 0.0
        %1387 = vmatprep.subr.mxu0 0.0
        %1388 = vmatpush1.msra.mxu0 0.0
        %1389 = vmatprep.subr.mxu0 0.0
        %1390 = vmatpush1.msra.mxu0 0.0
        %1391 = vmatprep.subr.mxu0 0.0
        %1392 = vmatpush1.msra.mxu0 0.0
        %1393 = vmatprep.subr.mxu0 0.0
        %1394 = vmatpush1.msra.mxu0 0.0
        %1395 = vmatprep.subr.mxu0 0.0
        %1396 = vmatpush1.msra.mxu0 0.0
        %1397 = vmatprep.subr.mxu0 0.0
        %1398 = vmatpush1.msra.mxu0 0.0
        %1399 = vmatprep.subr.mxu0 0.0
        %1400 = vmatpush1.msra.mxu0 0.0
        %1401 = vmatprep.subr.mxu0 0.0
        %1402 = vmatpush1.msra.mxu0 0.0
        %1403 = vmatprep.subr.mxu0 0.0
        %1404 = vmatpush1.msra.mxu0 0.0
        %1405 = vmatprep.subr.mxu0 0.0
        %1406 = vmatpush1.msra.mxu0 0.0
        %1407 = vmatprep.subr.mxu0 0.0
        %1408 = vmatpush1.msra.mxu0 0.0
        %1409 = vmatprep.subr.mxu0 0.0
        %1410 = vmatpush1.msra.mxu0 0.0
        %1411 = vmatprep.subr.mxu0 0.0
        %1412 = vmatpush1.msra.mxu0 0.0
        %1413 = vmatprep.subr.mxu0 0.0
        %1414 = vmatpush1.msra.mxu0 0.0
        %1415 = vmatprep.mubr.f32.mxu0 0.0
        %1416 = vmatmul.mubr.f32.gmra.mrb[0].mxu0 %v1349
        %v1417 = vpop.f32.mrb[0].mxu0
        %v1418 = vadd.f32 0.0, %v1417
        %v1419 = vpop.f32.mrb[0].mxu0
        %1420 = vdwg.mxu0
        %v1421 = vadd.f32 %v1343, %v1418
        %1422 = vrot.lane.b32.xlu0 %v1113, 96
        %v1423 = vpop.permute.xlu0 %1422
        %1424 = vrot.lane.b32.xlu0 %v1112, 117
        %v1425 = vpop.permute.xlu0 %1424
        %v1427 = vsel %vm1121, %v1423, 0
        %1429 = vmatprep.subr.mxu0 0.0
        %1430 = vmatpush1.msra.mxu0 %v1425
        %1431 = vmatprep.subr.mxu0 0.0
        %1432 = vmatpush1.msra.mxu0 0.0
        %1433 = vmatprep.subr.mxu0 0.0
        %1434 = vmatpush1.msra.mxu0 0.0
        %1435 = vmatprep.subr.mxu0 0.0
        %1436 = vmatpush1.msra.mxu0 0.0
        %1437 = vmatprep.subr.mxu0 0.0
        %1438 = vmatpush1.msra.mxu0 0.0
        %1439 = vmatprep.subr.mxu0 0.0
        %1440 = vmatpush1.msra.mxu0 0.0
        %1441 = vmatprep.subr.mxu0 0.0
        %1442 = vmatpush1.msra.mxu0 0.0
        %1443 = vmatprep.subr.mxu0 0.0
        %1444 = vmatpush1.msra.mxu0 0.0
        %1445 = vmatprep.subr.mxu0 0.0
        %1446 = vmatpush1.msra.mxu0 0.0
        %1447 = vmatprep.subr.mxu0 0.0
        %1448 = vmatpush1.msra.mxu0 0.0
        %1449 = vmatprep.subr.mxu0 0.0
        %1450 = vmatpush1.msra.mxu0 0.0
        %1451 = vmatprep.subr.mxu0 0.0
        %1452 = vmatpush1.msra.mxu0 0.0
        %1453 = vmatprep.subr.mxu0 0.0
        %1454 = vmatpush1.msra.mxu0 0.0
        %1455 = vmatprep.subr.mxu0 0.0
        %1456 = vmatpush1.msra.mxu0 0.0
        %1457 = vmatprep.subr.mxu0 0.0
        %1458 = vmatpush1.msra.mxu0 0.0
        %1459 = vmatprep.subr.mxu0 0.0
        %1460 = vmatpush1.msra.mxu0 0.0
        %1461 = vmatprep.subr.mxu0 0.0
        %1462 = vmatpush1.msra.mxu0 0.0
        %1463 = vmatprep.subr.mxu0 0.0
        %1464 = vmatpush1.msra.mxu0 0.0
        %1465 = vmatprep.subr.mxu0 0.0
        %1466 = vmatpush1.msra.mxu0 0.0
        %1467 = vmatprep.subr.mxu0 0.0
        %1468 = vmatpush1.msra.mxu0 0.0
        %1469 = vmatprep.subr.mxu0 0.0
        %1470 = vmatpush1.msra.mxu0 0.0
        %1471 = vmatprep.subr.mxu0 0.0
        %1472 = vmatpush1.msra.mxu0 0.0
        %1473 = vmatprep.subr.mxu0 0.0
        %1474 = vmatpush1.msra.mxu0 0.0
        %1475 = vmatprep.subr.mxu0 0.0
        %1476 = vmatpush1.msra.mxu0 0.0
        %1477 = vmatprep.subr.mxu0 0.0
        %1478 = vmatpush1.msra.mxu0 0.0
        %1479 = vmatprep.subr.mxu0 0.0
        %1480 = vmatpush1.msra.mxu0 0.0
        %1481 = vmatprep.subr.mxu0 0.0
        %1482 = vmatpush1.msra.mxu0 0.0
        %1483 = vmatprep.subr.mxu0 0.0
        %1484 = vmatpush1.msra.mxu0 0.0
        %1485 = vmatprep.subr.mxu0 0.0
        %1486 = vmatpush1.msra.mxu0 0.0
        %1487 = vmatprep.subr.mxu0 0.0
        %1488 = vmatpush1.msra.mxu0 0.0
        %1489 = vmatprep.subr.mxu0 0.0
        %1490 = vmatpush1.msra.mxu0 0.0
        %1491 = vmatprep.subr.mxu0 0.0
        %1492 = vmatpush1.msra.mxu0 0.0
        %1493 = vmatprep.mubr.f32.mxu0 0.0
        %1494 = vmatmul.mubr.f32.gmra.mrb[0].mxu0 %v1427
        %v1495 = vpop.f32.mrb[0].mxu0
        %v1496 = vadd.f32 0.0, %v1495
        %v1497 = vpop.f32.mrb[0].mxu0
        %1498 = vdwg.mxu0
        %v1499 = vadd.f32 %v1421, %v1496
        %1500 = vrot.lane.b32.xlu0 %v1113, 88
        %v1501 = vpop.permute.xlu0 %1500
        %1502 = vrot.lane.b32.xlu0 %v1112, 116
        %v1503 = vpop.permute.xlu0 %1502
        %v1505 = vsel %vm1121, %v1501, 0
        %1507 = vmatprep.subr.mxu0 0.0
        %1508 = vmatpush1.msra.mxu0 %v1503
        %1509 = vmatprep.subr.mxu0 0.0
        %1510 = vmatpush1.msra.mxu0 0.0
        %1511 = vmatprep.subr.mxu0 0.0
        %1512 = vmatpush1.msra.mxu0 0.0
        %1513 = vmatprep.subr.mxu0 0.0
        %1514 = vmatpush1.msra.mxu0 0.0
        %1515 = vmatprep.subr.mxu0 0.0
        %1516 = vmatpush1.msra.mxu0 0.0
        %1517 = vmatprep.subr.mxu0 0.0
        %1518 = vmatpush1.msra.mxu0 0.0
        %1519 = vmatprep.subr.mxu0 0.0
        %1520 = vmatpush1.msra.mxu0 0.0
        %1521 = vmatprep.subr.mxu0 0.0
        %1522 = vmatpush1.msra.mxu0 0.0
        %1523 = vmatprep.subr.mxu0 0.0
        %1524 = vmatpush1.msra.mxu0 0.0
        %1525 = vmatprep.subr.mxu0 0.0
        %1526 = vmatpush1.msra.mxu0 0.0
        %1527 = vmatprep.subr.mxu0 0.0
        %1528 = vmatpush1.msra.mxu0 0.0
        %1529 = vmatprep.subr.mxu0 0.0
        %1530 = vmatpush1.msra.mxu0 0.0
        %1531 = vmatprep.subr.mxu0 0.0
        %1532 = vmatpush1.msra.mxu0 0.0
        %1533 = vmatprep.subr.mxu0 0.0
        %1534 = vmatpush1.msra.mxu0 0.0
        %1535 = vmatprep.subr.mxu0 0.0
        %1536 = vmatpush1.msra.mxu0 0.0
        %1537 = vmatprep.subr.mxu0 0.0
        %1538 = vmatpush1.msra.mxu0 0.0
        %1539 = vmatprep.subr.mxu0 0.0
        %1540 = vmatpush1.msra.mxu0 0.0
        %1541 = vmatprep.subr.mxu0 0.0
        %1542 = vmatpush1.msra.mxu0 0.0
        %1543 = vmatprep.subr.mxu0 0.0
        %1544 = vmatpush1.msra.mxu0 0.0
        %1545 = vmatprep.subr.mxu0 0.0
        %1546 = vmatpush1.msra.mxu0 0.0
        %1547 = vmatprep.subr.mxu0 0.0
        %1548 = vmatpush1.msra.mxu0 0.0
        %1549 = vmatprep.subr.mxu0 0.0
        %1550 = vmatpush1.msra.mxu0 0.0
        %1551 = vmatprep.subr.mxu0 0.0
        %1552 = vmatpush1.msra.mxu0 0.0
        %1553 = vmatprep.subr.mxu0 0.0
        %1554 = vmatpush1.msra.mxu0 0.0
        %1555 = vmatprep.subr.mxu0 0.0
        %1556 = vmatpush1.msra.mxu0 0.0
        %1557 = vmatprep.subr.mxu0 0.0
        %1558 = vmatpush1.msra.mxu0 0.0
        %1559 = vmatprep.subr.mxu0 0.0
        %1560 = vmatpush1.msra.mxu0 0.0
        %1561 = vmatprep.subr.mxu0 0.0
        %1562 = vmatpush1.msra.mxu0 0.0
        %1563 = vmatprep.subr.mxu0 0.0
        %1564 = vmatpush1.msra.mxu0 0.0
        %1565 = vmatprep.subr.mxu0 0.0
        %1566 = vmatpush1.msra.mxu0 0.0
        %1567 = vmatprep.subr.mxu0 0.0
        %1568 = vmatpush1.msra.mxu0 0.0
        %1569 = vmatprep.subr.mxu0 0.0
        %1570 = vmatpush1.msra.mxu0 0.0
        %1571 = vmatprep.mubr.f32.mxu0 0.0
        %1572 = vmatmul.mubr.f32.gmra.mrb[0].mxu0 %v1505
        %v1573 = vpop.f32.mrb[0].mxu0
        %v1574 = vadd.f32 0.0, %v1573
        %v1575 = vpop.f32.mrb[0].mxu0
        %1576 = vdwg.mxu0
        %v1577 = vadd.f32 %v1499, %v1574
        %1578 = vrot.lane.b32.xlu0 %v1113, 80
        %v1579 = vpop.permute.xlu0 %1578
        %1580 = vrot.lane.b32.xlu0 %v1112, 108
        %v1581 = vpop.permute.xlu0 %1580
        %v1583 = vsel %vm1121, %v1579, 0
        %1585 = vmatprep.subr.mxu0 0.0
        %1586 = vmatpush1.msra.mxu0 %v1581
        %1587 = vmatprep.subr.mxu0 0.0
        %1588 = vmatpush1.msra.mxu0 0.0
        %1589 = vmatprep.subr.mxu0 0.0
        %1590 = vmatpush1.msra.mxu0 0.0
        %1591 = vmatprep.subr.mxu0 0.0
        %1592 = vmatpush1.msra.mxu0 0.0
        %1593 = vmatprep.subr.mxu0 0.0
        %1594 = vmatpush1.msra.mxu0 0.0
        %1595 = vmatprep.subr.mxu0 0.0
        %1596 = vmatpush1.msra.mxu0 0.0
        %1597 = vmatprep.subr.mxu0 0.0
        %1598 = vmatpush1.msra.mxu0 0.0
        %1599 = vmatprep.subr.mxu0 0.0
        %1600 = vmatpush1.msra.mxu0 0.0
        %1601 = vmatprep.subr.mxu0 0.0
        %1602 = vmatpush1.msra.mxu0 0.0
        %1603 = vmatprep.subr.mxu0 0.0
        %1604 = vmatpush1.msra.mxu0 0.0
        %1605 = vmatprep.subr.mxu0 0.0
        %1606 = vmatpush1.msra.mxu0 0.0
        %1607 = vmatprep.subr.mxu0 0.0
        %1608 = vmatpush1.msra.mxu0 0.0
        %1609 = vmatprep.subr.mxu0 0.0
        %1610 = vmatpush1.msra.mxu0 0.0
        %1611 = vmatprep.subr.mxu0 0.0
        %1612 = vmatpush1.msra.mxu0 0.0
        %1613 = vmatprep.subr.mxu0 0.0
        %1614 = vmatpush1.msra.mxu0 0.0
        %1615 = vmatprep.subr.mxu0 0.0
        %1616 = vmatpush1.msra.mxu0 0.0
        %1617 = vmatprep.subr.mxu0 0.0
        %1618 = vmatpush1.msra.mxu0 0.0
        %1619 = vmatprep.subr.mxu0 0.0
        %1620 = vmatpush1.msra.mxu0 0.0
        %1621 = vmatprep.subr.mxu0 0.0
        %1622 = vmatpush1.msra.mxu0 0.0
        %1623 = vmatprep.subr.mxu0 0.0
        %1624 = vmatpush1.msra.mxu0 0.0
        %1625 = vmatprep.subr.mxu0 0.0
        %1626 = vmatpush1.msra.mxu0 0.0
        %1627 = vmatprep.subr.mxu0 0.0
        %1628 = vmatpush1.msra.mxu0 0.0
        %1629 = vmatprep.subr.mxu0 0.0
        %1630 = vmatpush1.msra.mxu0 0.0
        %1631 = vmatprep.subr.mxu0 0.0
        %1632 = vmatpush1.msra.mxu0 0.0
        %1633 = vmatprep.subr.mxu0 0.0
        %1634 = vmatpush1.msra.mxu0 0.0
        %1635 = vmatprep.subr.mxu0 0.0
        %1636 = vmatpush1.msra.mxu0 0.0
        %1637 = vmatprep.subr.mxu0 0.0
        %1638 = vmatpush1.msra.mxu0 0.0
        %1639 = vmatprep.subr.mxu0 0.0
        %1640 = vmatpush1.msra.mxu0 0.0
        %1641 = vmatprep.subr.mxu0 0.0
        %1642 = vmatpush1.msra.mxu0 0.0
        %1643 = vmatprep.subr.mxu0 0.0
        %1644 = vmatpush1.msra.mxu0 0.0
        %1645 = vmatprep.subr.mxu0 0.0
        %1646 = vmatpush1.msra.mxu0 0.0
        %1647 = vmatprep.subr.mxu0 0.0
        %1648 = vmatpush1.msra.mxu0 0.0
        %1649 = vmatprep.mubr.f32.mxu0 0.0
        %1650 = vmatmul.mubr.f32.gmra.mrb[0].mxu0 %v1583
        %v1651 = vpop.f32.mrb[0].mxu0
        %v1652 = vadd.f32 0.0, %v1651
        %v1653 = vpop.f32.mrb[0].mxu0
        %1654 = vdwg.mxu0
        %v1655 = vadd.f32 %v1577, %v1652
        %1656 = vrot.lane.b32.xlu0 %v1113, 72
        %v1657 = vpop.permute.xlu0 %1656
        %1658 = vrot.lane.b32.xlu0 %v1112, 107
        %v1659 = vpop.permute.xlu0 %1658
        %v1661 = vsel %vm1121, %v1657, 0
        %1663 = vmatprep.subr.mxu0 0.0
        %1664 = vmatpush1.msra.mxu0 %v1659
        %1665 = vmatprep.subr.mxu0 0.0
        %1666 = vmatpush1.msra.mxu0 0.0
        %1667 = vmatprep.subr.mxu0 0.0
        %1668 = vmatpush1.msra.mxu0 0.0
        %1669 = vmatprep.subr.mxu0 0.0
        %1670 = vmatpush1.msra.mxu0 0.0
        %1671 = vmatprep.subr.mxu0 0.0
        %1672 = vmatpush1.msra.mxu0 0.0
        %1673 = vmatprep.subr.mxu0 0.0
        %1674 = vmatpush1.msra.mxu0 0.0
        %1675 = vmatprep.subr.mxu0 0.0
        %1676 = vmatpush1.msra.mxu0 0.0
        %1677 = vmatprep.subr.mxu0 0.0
        %1678 = vmatpush1.msra.mxu0 0.0
        %1679 = vmatprep.subr.mxu0 0.0
        %1680 = vmatpush1.msra.mxu0 0.0
        %1681 = vmatprep.subr.mxu0 0.0
        %1682 = vmatpush1.msra.mxu0 0.0
        %1683 = vmatprep.subr.mxu0 0.0
        %1684 = vmatpush1.msra.mxu0 0.0
        %1685 = vmatprep.subr.mxu0 0.0
        %1686 = vmatpush1.msra.mxu0 0.0
        %1687 = vmatprep.subr.mxu0 0.0
        %1688 = vmatpush1.msra.mxu0 0.0
        %1689 = vmatprep.subr.mxu0 0.0
        %1690 = vmatpush1.msra.mxu0 0.0
        %1691 = vmatprep.subr.mxu0 0.0
        %1692 = vmatpush1.msra.mxu0 0.0
        %1693 = vmatprep.subr.mxu0 0.0
        %1694 = vmatpush1.msra.mxu0 0.0
        %1695 = vmatprep.subr.mxu0 0.0
        %1696 = vmatpush1.msra.mxu0 0.0
        %1697 = vmatprep.subr.mxu0 0.0
        %1698 = vmatpush1.msra.mxu0 0.0
        %1699 = vmatprep.subr.mxu0 0.0
        %1700 = vmatpush1.msra.mxu0 0.0
        %1701 = vmatprep.subr.mxu0 0.0
        %1702 = vmatpush1.msra.mxu0 0.0
        %1703 = vmatprep.subr.mxu0 0.0
        %1704 = vmatpush1.msra.mxu0 0.0
        %1705 = vmatprep.subr.mxu0 0.0
        %1706 = vmatpush1.msra.mxu0 0.0
        %1707 = vmatprep.subr.mxu0 0.0
        %1708 = vmatpush1.msra.mxu0 0.0
        %1709 = vmatprep.subr.mxu0 0.0
        %1710 = vmatpush1.msra.mxu0 0.0
        %1711 = vmatprep.subr.mxu0 0.0
        %1712 = vmatpush1.msra.mxu0 0.0
        %1713 = vmatprep.subr.mxu0 0.0
        %1714 = vmatpush1.msra.mxu0 0.0
        %1715 = vmatprep.subr.mxu0 0.0
        %1716 = vmatpush1.msra.mxu0 0.0
        %1717 = vmatprep.subr.mxu0 0.0
        %1718 = vmatpush1.msra.mxu0 0.0
        %1719 = vmatprep.subr.mxu0 0.0
        %1720 = vmatpush1.msra.mxu0 0.0
        %1721 = vmatprep.subr.mxu0 0.0
        %1722 = vmatpush1.msra.mxu0 0.0
        %1723 = vmatprep.subr.mxu0 0.0
        %1724 = vmatpush1.msra.mxu0 0.0
        %1725 = vmatprep.subr.mxu0 0.0
        %1726 = vmatpush1.msra.mxu0 0.0
        %1727 = vmatprep.mubr.f32.mxu0 0.0
        %1728 = vmatmul.mubr.f32.gmra.mrb[0].mxu0 %v1661
        %v1729 = vpop.f32.mrb[0].mxu0
        %v1730 = vadd.f32 0.0, %v1729
        %v1731 = vpop.f32.mrb[0].mxu0
        %1732 = vdwg.mxu0
        %v1733 = vadd.f32 %v1655, %v1730
        %1734 = vrot.lane.b32.xlu0 %v1113, 64
        %v1735 = vpop.permute.xlu0 %1734
        %1736 = vrot.lane.b32.xlu0 %v1112, 106
        %v1737 = vpop.permute.xlu0 %1736
        %v1739 = vsel %vm1121, %v1735, 0
        %1741 = vmatprep.subr.mxu0 0.0
        %1742 = vmatpush1.msra.mxu0 %v1737
        %1743 = vmatprep.subr.mxu0 0.0
        %1744 = vmatpush1.msra.mxu0 0.0
        %1745 = vmatprep.subr.mxu0 0.0
        %1746 = vmatpush1.msra.mxu0 0.0
        %1747 = vmatprep.subr.mxu0 0.0
        %1748 = vmatpush1.msra.mxu0 0.0
        %1749 = vmatprep.subr.mxu0 0.0
        %1750 = vmatpush1.msra.mxu0 0.0
        %1751 = vmatprep.subr.mxu0 0.0
        %1752 = vmatpush1.msra.mxu0 0.0
        %1753 = vmatprep.subr.mxu0 0.0
        %1754 = vmatpush1.msra.mxu0 0.0
        %1755 = vmatprep.subr.mxu0 0.0
        %1756 = vmatpush1.msra.mxu0 0.0
        %1757 = vmatprep.subr.mxu0 0.0
        %1758 = vmatpush1.msra.mxu0 0.0
        %1759 = vmatprep.subr.mxu0 0.0
        %1760 = vmatpush1.msra.mxu0 0.0
        %1761 = vmatprep.subr.mxu0 0.0
        %1762 = vmatpush1.msra.mxu0 0.0
        %1763 = vmatprep.subr.mxu0 0.0
        %1764 = vmatpush1.msra.mxu0 0.0
        %1765 = vmatprep.subr.mxu0 0.0
        %1766 = vmatpush1.msra.mxu0 0.0
        %1767 = vmatprep.subr.mxu0 0.0
        %1768 = vmatpush1.msra.mxu0 0.0
        %1769 = vmatprep.subr.mxu0 0.0
        %1770 = vmatpush1.msra.mxu0 0.0
        %1771 = vmatprep.subr.mxu0 0.0
        %1772 = vmatpush1.msra.mxu0 0.0
        %1773 = vmatprep.subr.mxu0 0.0
        %1774 = vmatpush1.msra.mxu0 0.0
        %1775 = vmatprep.subr.mxu0 0.0
        %1776 = vmatpush1.msra.mxu0 0.0
        %1777 = vmatprep.subr.mxu0 0.0
        %1778 = vmatpush1.msra.mxu0 0.0
        %1779 = vmatprep.subr.mxu0 0.0
        %1780 = vmatpush1.msra.mxu0 0.0
        %1781 = vmatprep.subr.mxu0 0.0
        %1782 = vmatpush1.msra.mxu0 0.0
        %1783 = vmatprep.subr.mxu0 0.0
        %1784 = vmatpush1.msra.mxu0 0.0
        %1785 = vmatprep.subr.mxu0 0.0
        %1786 = vmatpush1.msra.mxu0 0.0
        %1787 = vmatprep.subr.mxu0 0.0
        %1788 = vmatpush1.msra.mxu0 0.0
        %1789 = vmatprep.subr.mxu0 0.0
        %1790 = vmatpush1.msra.mxu0 0.0
        %1791 = vmatprep.subr.mxu0 0.0
        %1792 = vmatpush1.msra.mxu0 0.0
        %1793 = vmatprep.subr.mxu0 0.0
        %1794 = vmatpush1.msra.mxu0 0.0
        %1795 = vmatprep.subr.mxu0 0.0
        %1796 = vmatpush1.msra.mxu0 0.0
        %1797 = vmatprep.subr.mxu0 0.0
        %1798 = vmatpush1.msra.mxu0 0.0
        %1799 = vmatprep.subr.mxu0 0.0
        %1800 = vmatpush1.msra.mxu0 0.0
        %1801 = vmatprep.subr.mxu0 0.0
        %1802 = vmatpush1.msra.mxu0 0.0
        %1803 = vmatprep.subr.mxu0 0.0
        %1804 = vmatpush1.msra.mxu0 0.0
        %1805 = vmatprep.mubr.f32.mxu0 0.0
        %1806 = vmatmul.mubr.f32.gmra.mrb[0].mxu0 %v1739
        %v1807 = vpop.f32.mrb[0].mxu0
        %v1808 = vadd.f32 0.0, %v1807
        %v1809 = vpop.f32.mrb[0].mxu0
        %1810 = vdwg.mxu0
        %v1811 = vadd.f32 %v1733, %v1808
        %v1812 = vmax.f32 %v1811, 0.0
        %v1813 = vld [vmem:[%s5] sm:$0xff]
        %v1814 = vld [vmem:[%s5 + $0x8] sm:$0xff]
        %v1815 = vld [vmem:[%s5 + $0x10] sm:$0xff]
        %v1816 = vld [vmem:[%s5 + $0x18] sm:$0xff]
        %v1817 = vld [vmem:[%s5 + $0x20] sm:$0xff]
        %v1818 = vld [vmem:[%s5 + $0x28] sm:$0xff]
        %v1819 = vld [vmem:[%s5 + $0x30] sm:$0xff]
        %v1820 = vld [vmem:[%s5 + $0x38] sm:$0xff]
        %v1821 = vld [vmem:[%s5 + $0x40] sm:$0xff]
        %v1822 = vld [vmem:[%s5 + $0x48] sm:$0xff]
        %v1823 = vld [vmem:[%s5 + $0x50] sm:$0xff]
        %v1824 = vld [vmem:[%s5 + $0x58] sm:$0xff]
        %v1825 = vld [vmem:[%s5 + $0x60] sm:$0xf]
        %vm1826 = vcmask 818176
        %v1828 = vsel %vm1826, %v1812, 0
        %v1831 = vsel %vm395, %v1825, 0
        %1833 = vmatprep.subr.mxu0 0.0
        %1834 = vmatpush1.msra.mxu0 %v1813
        %1835 = vmatprep.subr.mxu0 0.0
        %1836 = vmatpush1.msra.mxu0 %v1814
        %1837 = vmatprep.subr.mxu0 0.0
        %1838 = vmatpush1.msra.mxu0 %v1815
        %1839 = vmatprep.subr.mxu0 0.0
        %1840 = vmatpush1.msra.mxu0 %v1816
        %1841 = vmatprep.subr.mxu0 0.0
        %1842 = vmatpush1.msra.mxu0 %v1817
        %1843 = vmatprep.subr.mxu0 0.0
        %1844 = vmatpush1.msra.mxu0 %v1818
        %1845 = vmatprep.subr.mxu0 0.0
        %1846 = vmatpush1.msra.mxu0 %v1819
        %1847 = vmatprep.subr.mxu0 0.0
        %1848 = vmatpush1.msra.mxu0 %v1820
        %1849 = vmatprep.subr.mxu0 0.0
        %1850 = vmatpush1.msra.mxu0 %v1821
        %1851 = vmatprep.subr.mxu0 0.0
        %1852 = vmatpush1.msra.mxu0 %v1822
        %1853 = vmatprep.subr.mxu0 0.0
        %1854 = vmatpush1.msra.mxu0 %v1823
        %1855 = vmatprep.subr.mxu0 0.0
        %1856 = vmatpush1.msra.mxu0 %v1824
        %1857 = vmatprep.subr.mxu0 0.0
        %1858 = vmatpush1.msra.mxu0 %v1831
        %1859 = vmatprep.subr.mxu0 0.0
        %1860 = vmatpush1.msra.mxu0 0.0
        %1861 = vmatprep.subr.mxu0 0.0
        %1862 = vmatpush1.msra.mxu0 0.0
        %1863 = vmatprep.subr.mxu0 0.0
        %1864 = vmatpush1.msra.mxu0 0.0
        %1865 = vmatprep.subr.mxu0 0.0
        %1866 = vmatpush1.msra.mxu0 0.0
        %1867 = vmatprep.subr.mxu0 0.0
        %1868 = vmatpush1.msra.mxu0 0.0
        %1869 = vmatprep.subr.mxu0 0.0
        %1870 = vmatpush1.msra.mxu0 0.0
        %1871 = vmatprep.subr.mxu0 0.0
        %1872 = vmatpush1.msra.mxu0 0.0
        %1873 = vmatprep.subr.mxu0 0.0
        %1874 = vmatpush1.msra.mxu0 0.0
        %1875 = vmatprep.subr.mxu0 0.0
        %1876 = vmatpush1.msra.mxu0 0.0
        %1877 = vmatprep.subr.mxu0 0.0
        %1878 = vmatpush1.msra.mxu0 0.0
        %1879 = vmatprep.subr.mxu0 0.0
        %1880 = vmatpush1.msra.mxu0 0.0
        %1881 = vmatprep.subr.mxu0 0.0
        %1882 = vmatpush1.msra.mxu0 0.0
        %1883 = vmatprep.subr.mxu0 0.0
        %1884 = vmatpush1.msra.mxu0 0.0
        %1885 = vmatprep.subr.mxu0 0.0
        %1886 = vmatpush1.msra.mxu0 0.0
        %1887 = vmatprep.subr.mxu0 0.0
        %1888 = vmatpush1.msra.mxu0 0.0
        %1889 = vmatprep.subr.mxu0 0.0
        %1890 = vmatpush1.msra.mxu0 0.0
        %1891 = vmatprep.subr.mxu0 0.0
        %1892 = vmatpush1.msra.mxu0 0.0
        %1893 = vmatprep.subr.mxu0 0.0
        %1894 = vmatpush1.msra.mxu0 0.0
        %1895 = vmatprep.subr.mxu0 0.0
        %1896 = vmatpush1.msra.mxu0 0.0
        %1897 = vmatprep.mubr.f32.mxu0 0.0
        %1898 = vmatmul.mubr.f32.gmra.mrb[0].mxu0 %v1828
        %v1899 = vpop.f32.mrb[0].mxu0
        %v1900 = vadd.f32 0.0, %v1899
        %v1901 = vpop.f32.mrb[0].mxu0
        %1902 = vdwg.mxu0
        %vm1903 = vcmask 523264
        %1904 = vst.msk [vmem:[%s244] sm:$0xff] %vm1903, %v1900
        %s1905 = sand.u32 %s159, 1
        %s1906 = scalar_lea.sflag [#allocation5], %s1905
        %s1907 = sand.u32 %s159, 1
        %s1908 = smul.addr %s1907, 8
        %s1909 = scalar_lea.vmem [#allocation4], %s1908
        // Predicated region
        $region45: #{tpu_custom_call.1} parent=43 // pred_check
          %p1910 = pneg %p169
        $region46: #{tpu_custom_call.1} parent=43 // pred_check_branch
          %1912 = sbr.rel (%p1910) target = $region48
        $region47: #{tpu_custom_call.1} parent=43 // pred_region
          %s1914 = ssub.s32 128, 128
          %1915 = vsyncadd %s1906, %s1914
          %s1916 = smul.addr %s20, 128
          %s1917 = scalar_lea.hbm %s6, %s1916
          %s1919 = sshll.u32 %s1909, 4
          %s1920 = int_to_ptr.vmem [resolvable:$true] %s1919
          %1922 = dma.vmem_to_hbm [thread:$0]  %s1920, 128, %s1917, %s1906
        $region48: #{tpu_custom_call.1} parent=43 // pred_fallthru
          _
      $region44: #{tpu_custom_call.1} parent=5 // pred_fallthru
        _
      %p1923 = scmp.le.s32.totalorder 2, %s15
      // Predicated region
      $region49: #{tpu_custom_call.1} parent=5 // pred_check
        %p1924 = pneg %p1923
      $region50: #{tpu_custom_call.1} parent=5 // pred_check_branch
        %1926 = sbr.rel (%p1924) target = $region52
      $region51: #{tpu_custom_call.1} parent=5 // pred_region
        %s1927 = ssub.s32 %s15, 2
        // Predicated region
        $region53: #{tpu_custom_call.1} parent=51 // pred_check
          %p1928 = pneg %p175
        $region54: #{tpu_custom_call.1} parent=51 // pred_check_branch
          %1930 = sbr.rel (%p1928) target = $region56
        $region55: #{tpu_custom_call.1} parent=51 // pred_region
          %s1931 = sand.u32 %s160, 1
          %s1932 = scalar_lea.sflag [#allocation5], %s1931
          %s1933 = sand.u32 %s160, 1
          %s1934 = smul.addr %s1933, 8
          %s1935 = scalar_lea.vmem [#allocation4], %s1934
          %1936 = dma.done %s1932, 128
        $region56: #{tpu_custom_call.1} parent=51 // pred_fallthru
          _
      $region52: #{tpu_custom_call.1} parent=5 // pred_fallthru
        _
    $region6: #{tpu_custom_call.1} parent=1 // loop_footer
      %s19 = sadd.s32 1, %s15
    $region7: #{tpu_custom_call.1} parent=1 // loop_footer_branch
      %14 = sbr.rel target = $region3
    $region8: #{tpu_custom_call.1} parent=1 // loop_exit
      _
    %1937 = vsyncpa [#allocation5], 1
    %s1938 = scalar_lea.sflag [#allocation5], 1
    %1939 = vsyncpa %s1938, 1

</llo_original>
